<compile_context>
chip_gen: v7x
topology: tpu7x:2x2x1
jax: 0.10.0
libtpu: 0.0.40
codegen_flags: <defaults>
</compile_context>

<pallas_src>
import functools

import jax
import jax.numpy as jnp
from jax.experimental import pallas as pl
from jax.experimental.pallas import tpu as pltpu


def _round_up(x: int, m: int) -> int:
    return ((x + m - 1) // m) * m


# --------------------------------------------------------------------------
# Fused SegRNN kernel: RevIN-norm + embedding + GRU encoder + pmf decode +
# predict head + RevIN-denorm.  One grid step handles TN (batch*channel) rows.
#   x_ref  : (TN, T*S)   lane-dense raw input rows
#   pe_ref : (TN, SY*D)  per-row positional/channel embedding (SY slices)
#   y_ref  : (TN, SY*S)  de-normalized prediction rows
# --------------------------------------------------------------------------
def _segrnn_kernel(x_ref, pe_ref, w_big_ref, colsum_ref, b_big_ref,
                   wi_ref, bi_ref, wh_ref, bh_ref, wpred_ref, bpred_ref,
                   y_ref, *, seg_num_x, seg_num_y, d_model, eps):
    f32 = jnp.float32
    D = d_model

    x = x_ref[...].astype(f32)                            # (TN, T*S)
    tn = x.shape[0]

    # RevIN statistics over the whole sequence of each row (population var).
    mean = jnp.mean(x, axis=1, keepdims=True)             # (TN, 1)
    d = x - mean
    var = jnp.mean(d * d, axis=1, keepdims=True)
    inv = jax.lax.rsqrt(var + eps)                        # 1 / stdev
    std = (var + eps) * inv                               # == sqrt(var + eps)

    # valueEmbedding for all T segments in ONE matmul (block-diagonal weight),
    # with the RevIN affine folded through the linear layer:
    #   relu(((x - mean)*inv) @ W + b) == relu(inv*(x@W) - inv*mean*colsum(W) + b)
    emb_pre = jnp.dot(x, w_big_ref[...].astype(f32),
                      preferred_element_type=f32)         # (TN, T*D)
    emb = jnp.maximum(
        inv * emb_pre - (inv * mean) * colsum_ref[...].astype(f32)
        + b_big_ref[...].astype(f32),
        0.0)

    # GRU weights, gates concatenated as [r | z | n] on the last dim.
    wi = wi_ref[...].astype(f32)                          # (D, 3D)
    bi = bi_ref[...].astype(f32)                          # (1, 3D)
    wh = wh_ref[...].astype(f32)                          # (D, 3D)
    bh = bh_ref[...].astype(f32)                          # (1, 3D)

    def gru_step(xt, h):
        gi = jnp.dot(xt, wi, preferred_element_type=f32) + bi   # (TN, 3D)
        gh = jnp.dot(h, wh, preferred_element_type=f32) + bh    # (TN, 3D)
        rz = jax.nn.sigmoid(gi[:, :2 * D] + gh[:, :2 * D])      # fused r|z
        r = rz[:, :D]
        z = rz[:, D:]
        n = jnp.tanh(gi[:, 2 * D:] + r * gh[:, 2 * D:])
        return (1.0 - z) * n + z * h

    # Encoder recurrence (seg_num_x == 6 -> static unroll).  The embedding is
    # already computed, so the loop body is pure GRU (2 matmuls on the chain).
    h = jnp.zeros((tn, D), dtype=f32)
    for t in range(seg_num_x):
        h = gru_step(emb[:, t * D:(t + 1) * D], h)

    # pmf decode: SY independent single GRU steps from hn, predict, denorm.
    pe = pe_ref[...].astype(f32)                          # (TN, SY*D)
    wpred = wpred_ref[...].astype(f32)                    # (D, S)
    bpred = bpred_ref[...].astype(f32)                    # (1, S)
    parts = []
    for s in range(seg_num_y):
        hs = gru_step(pe[:, s * D:(s + 1) * D], h)
        ys = jnp.dot(hs, wpred, preferred_element_type=f32) + bpred
        parts.append(ys * std + mean)                     # RevIN denorm fused
    y = jnp.concatenate(parts, axis=1)                    # (TN, SY*S)
    y_ref[...] = y.astype(y_ref.dtype)


# --------------------------------------------------------------------------
# Parameters (deterministic init).  GRU gate weights are stored concatenated
# as (D, 3D) with gate order [r | z | n].
# --------------------------------------------------------------------------
def init_segrnn_params(key, cfg):
    S, D = cfg["seg_len"], cfg["d_model"]
    C, SY = cfg["enc_in"], cfg["seg_num_y"]
    ks = jax.random.split(key, 10)
    s_emb = 1.0 / float(S) ** 0.5
    s_d = 1.0 / float(D) ** 0.5
    return dict(
        w_emb=jax.random.uniform(ks[0], (S, D), jnp.float32, -s_emb, s_emb),
        b_emb=jax.random.uniform(ks[1], (1, D), jnp.float32, -s_emb, s_emb),
        gru_w_i=jax.random.uniform(ks[2], (D, 3 * D), jnp.float32, -s_d, s_d),
        gru_b_i=jax.random.uniform(ks[3], (1, 3 * D), jnp.float32, -s_d, s_d),
        gru_w_h=jax.random.uniform(ks[4], (D, 3 * D), jnp.float32, -s_d, s_d),
        gru_b_h=jax.random.uniform(ks[5], (1, 3 * D), jnp.float32, -s_d, s_d),
        pos_emb=jax.random.normal(ks[6], (SY, D // 2), jnp.float32),
        channel_emb=jax.random.normal(ks[7], (C, D // 2), jnp.float32),
        w_pred=jax.random.uniform(ks[8], (D, S), jnp.float32, -s_d, s_d),
        b_pred=jax.random.uniform(ks[9], (1, S), jnp.float32, -s_d, s_d),
    )


# --------------------------------------------------------------------------
# SegRNN forward wrapper (revin=1, gru, pmf, channel_id=1).
# --------------------------------------------------------------------------
def segrnn_forward(params, x, *, cfg):
    """x: (B, seq_len, enc_in) -> (B, pred_len, enc_in)."""
    B, L, C = x.shape
    T, S = cfg["seg_num_x"], cfg["seg_len"]
    D, SY = cfg["d_model"], cfg["seg_num_y"]
    eps = cfg["eps"]
    pred_len = SY * S
    assert L == T * S and C == cfg["enc_in"]

    # (B, L, C) -> (B, C, L) -> (B*C, T*S); lane-dense rows (seq_len on lanes).
    N = B * C
    x_rows = jnp.transpose(x, (0, 2, 1)).reshape(N, T * S)

    # Per-row positional/channel embedding, PyTorch order m = b*C*SY + c*SY + s.
    pe_cd = jnp.concatenate(
        [jnp.tile(params["pos_emb"][None, :, :], (C, 1, 1)),       # (C, SY, D/2)
         jnp.tile(params["channel_emb"][:, None, :], (1, SY, 1))], # (C, SY, D/2)
        axis=-1).reshape(C, SY * D)
    pe_rows = jnp.tile(pe_cd, (B, 1))                              # (N, SY*D)

    # Derived weights: block-diagonal embedding weight (all T segments in one
    # matmul) + the column-sum term for the fused RevIN affine.
    w_big = jnp.kron(jnp.eye(T, dtype=jnp.float32), params["w_emb"])   # (T*S, T*D)
    colsum_big = jnp.tile(jnp.sum(params["w_emb"], axis=0, keepdims=True),
                          (1, T))                                       # (1, T*D)
    b_big = jnp.tile(params["b_emb"], (1, T))                           # (1, T*D)

    # Row tiling: big tiles, but always >= 2 grid steps when N > 8 so both
    # v7x TensorCores are used (no-op on single-TC v5e/v6e).
    ROW_ALIGN = 8
    TN_CAP = 512
    TN = min(_round_up(N, ROW_ALIGN), TN_CAP)
    if N > ROW_ALIGN:
        TN = min(TN, _round_up((N + 1) // 2, ROW_ALIGN))
    Npad = _round_up(N, TN)
    if Npad != N:
        pad = ((0, Npad - N), (0, 0))
        x_rows = jnp.pad(x_rows, pad)
        pe_rows = jnp.pad(pe_rows, pad)
    grid_n = Npad // TN

    y_rows = pl.pallas_call(
        functools.partial(_segrnn_kernel, seg_num_x=T, seg_num_y=SY,
                          d_model=D, eps=eps),
        out_shape=jax.ShapeDtypeStruct((Npad, pred_len), x.dtype),
        grid_spec=pltpu.PrefetchScalarGridSpec(
            num_scalar_prefetch=0,
            grid=(grid_n,),
            in_specs=[
                pl.BlockSpec((TN, T * S), lambda i: (i, 0)),        # x rows
                pl.BlockSpec((TN, SY * D), lambda i: (i, 0)),       # pe rows
                pl.BlockSpec((T * S, T * D), lambda i: (0, 0)),     # w_big
                pl.BlockSpec((1, T * D), lambda i: (0, 0)),         # colsum_big
                pl.BlockSpec((1, T * D), lambda i: (0, 0)),         # b_big
                pl.BlockSpec((D, 3 * D), lambda i: (0, 0)),         # gru_w_i
                pl.BlockSpec((1, 3 * D), lambda i: (0, 0)),         # gru_b_i
                pl.BlockSpec((D, 3 * D), lambda i: (0, 0)),         # gru_w_h
                pl.BlockSpec((1, 3 * D), lambda i: (0, 0)),         # gru_b_h
                pl.BlockSpec((D, S), lambda i: (0, 0)),             # w_pred
                pl.BlockSpec((1, S), lambda i: (0, 0)),             # b_pred
            ],
            out_specs=pl.BlockSpec((TN, pred_len), lambda i: (i, 0)),
        ),
        compiler_params=pltpu.CompilerParams(
            dimension_semantics=("parallel",)),
    )(x_rows, pe_rows, w_big, colsum_big, b_big,
      params["gru_w_i"], params["gru_b_i"], params["gru_w_h"],
      params["gru_b_h"], params["w_pred"], params["b_pred"])

    y_rows = y_rows[:N]                              # (N, pred_len), denormalized
    y = y_rows.reshape(B, C, pred_len)
    return jnp.transpose(y, (0, 2, 1))               # (B, pred_len, enc_in)


# --------------------------------------------------------------------------
# Pure-JAX reference mirroring the PyTorch SegRNN.forward exactly.
# --------------------------------------------------------------------------
def segrnn_forward_ref(params, x, *, cfg):
    B, L, C = x.shape
    T, S = cfg["seg_num_x"], cfg["seg_len"]
    D, SY = cfg["d_model"], cfg["seg_num_y"]
    eps = cfg["eps"]

    mean = jnp.mean(x, axis=1, keepdims=True)                    # (B,1,C)
    std = jnp.sqrt(jnp.var(x, axis=1, keepdims=True) + eps)      # unbiased=False
    xn = (x - mean) / std

    xr = jnp.transpose(xn, (0, 2, 1)).reshape(B * C, T, S)
    emb = jax.nn.relu(xr @ params["w_emb"] + params["b_emb"])    # (N, T, D)

    Wi, bi = params["gru_w_i"], params["gru_b_i"]
    Wh, bh = params["gru_w_h"], params["gru_b_h"]

    def cell(h, xt):
        gi = xt @ Wi + bi
        gh = h @ Wh + bh
        r = jax.nn.sigmoid(gi[:, :D] + gh[:, :D])
        z = jax.nn.sigmoid(gi[:, D:2 * D] + gh[:, D:2 * D])
        n = jnp.tanh(gi[:, 2 * D:] + r * gh[:, 2 * D:])
        return (1.0 - z) * n + z * h

    h = jnp.zeros((B * C, D), jnp.float32)
    for t in range(T):
        h = cell(h, emb[:, t, :])

    pe = jnp.concatenate(
        [jnp.tile(params["pos_emb"][None, :, :], (C, 1, 1)),
         jnp.tile(params["channel_emb"][:, None, :], (1, SY, 1))],
        axis=-1).reshape(C * SY, D)
    pe = jnp.tile(pe, (B, 1))
    h0 = jnp.repeat(h, SY, axis=0)
    hy = cell(h0, pe)
    y = hy @ params["w_pred"] + params["b_pred"]                 # (M, S)
    y = y.reshape(B, C, SY * S)
    y = jnp.transpose(y, (0, 2, 1))                              # (B, pred_len, C)
    return y * std + mean


if __name__ == "__main__":
    cfg = dict(seq_len=96, pred_len=32, enc_in=7, d_model=32,
               seg_len=16, eps=1e-5)
    cfg["seg_num_x"] = cfg["seq_len"] // cfg["seg_len"]   # 6
    cfg["seg_num_y"] = cfg["pred_len"] // cfg["seg_len"]  # 2

    key = jax.random.PRNGKey(0)
    kx, kp = jax.random.split(key)
    B = 2
    x = jax.random.normal(kx, (B, cfg["seq_len"], cfg["enc_in"]),
                          dtype=jnp.float32) * 2.0 + 0.5
    params = init_segrnn_params(kp, cfg)

    y = segrnn_forward(params, x, cfg=cfg)
    y = jax.block_until_ready(y)

    y_ref = segrnn_forward_ref(params, x, cfg=cfg)
    y_ref = jax.block_until_ready(y_ref)

    assert y.shape == (B, cfg["pred_len"], cfg["enc_in"]), y.shape
    max_err = float(jnp.max(jnp.abs(y - y_ref)))
    assert jnp.allclose(y, y_ref, atol=2e-3, rtol=2e-3), f"mismatch: {max_err}"

    print("KERNEL_OK")
</pallas_src>

<mosaic_0001>
module attributes {stable_mosaic.version = 11 : i64} {
  func.func @_segrnn_kernel(%arg0: i32, %arg1: memref<8x96xf32, #tpu.memory_space<vmem>>, %arg2: memref<8x64xf32, #tpu.memory_space<vmem>>, %arg3: memref<96x192xf32, #tpu.memory_space<vmem>>, %arg4: memref<1x192xf32, #tpu.memory_space<vmem>>, %arg5: memref<1x192xf32, #tpu.memory_space<vmem>>, %arg6: memref<32x96xf32, #tpu.memory_space<vmem>>, %arg7: memref<1x96xf32, #tpu.memory_space<vmem>>, %arg8: memref<32x96xf32, #tpu.memory_space<vmem>>, %arg9: memref<1x96xf32, #tpu.memory_space<vmem>>, %arg10: memref<32x16xf32, #tpu.memory_space<vmem>>, %arg11: memref<1x16xf32, #tpu.memory_space<vmem>>, %arg12: memref<8x32xf32, #tpu.memory_space<vmem>>) attributes {dimension_semantics = [#tpu.dimension_semantics<parallel>], iteration_bounds = array<i64: 2>, scalar_prefetch = 0 : i64, scratch_operands = 0 : i64, tpu.core_type = #tpu.core_type<tc>, window_params = [{transform_indices = @transform_0, window_bounds = array<i64: 8, 96>}, {transform_indices = @transform_1, window_bounds = array<i64: 8, 64>}, {pipeline_mode = #tpu.pipeline_mode<synchronous>, transform_indices = @transform_2, window_bounds = array<i64: 96, 192>}, {pipeline_mode = #tpu.pipeline_mode<synchronous>, transform_indices = @transform_3, window_bounds = array<i64: 1, 192>}, {pipeline_mode = #tpu.pipeline_mode<synchronous>, transform_indices = @transform_4, window_bounds = array<i64: 1, 192>}, {pipeline_mode = #tpu.pipeline_mode<synchronous>, transform_indices = @transform_5, window_bounds = array<i64: 32, 96>}, {pipeline_mode = #tpu.pipeline_mode<synchronous>, transform_indices = @transform_6, window_bounds = array<i64: 1, 96>}, {pipeline_mode = #tpu.pipeline_mode<synchronous>, transform_indices = @transform_7, window_bounds = array<i64: 32, 96>}, {pipeline_mode = #tpu.pipeline_mode<synchronous>, transform_indices = @transform_8, window_bounds = array<i64: 1, 96>}, {pipeline_mode = #tpu.pipeline_mode<synchronous>, transform_indices = @transform_9, window_bounds = array<i64: 32, 16>}, {pipeline_mode = #tpu.pipeline_mode<synchronous>, transform_indices = @transform_10, window_bounds = array<i64: 1, 16>}, {transform_indices = @transform_11, window_bounds = array<i64: 8, 32>}]} {
    %c0 = arith.constant 0 : index
    %c0_0 = arith.constant 0 : index
    %0 = vector.load %arg1[%c0, %c0_0] : memref<8x96xf32, #tpu.memory_space<vmem>>, vector<8x96xf32>
    %cst = arith.constant dense<0.000000e+00> : vector<8xf32>
    %1 = vector.multi_reduction <add>, %0, %cst [1] : vector<8x96xf32> to vector<8xf32>
    %2 = vector.shape_cast %1 : vector<8xf32> to vector<8x1xf32>
    %cst_1 = arith.constant 9.600000e+01 : f32
    %3 = vector.broadcast %cst_1 : f32 to vector<8x1xf32>
    %4 = arith.divf %2, %3 : vector<8x1xf32>
    %5 = vector.broadcast %4 : vector<8x1xf32> to vector<8x96xf32>
    %6 = arith.subf %0, %5 : vector<8x96xf32>
    %7 = arith.mulf %6, %6 : vector<8x96xf32>
    %cst_2 = arith.constant dense<0.000000e+00> : vector<8xf32>
    %8 = vector.multi_reduction <add>, %7, %cst_2 [1] : vector<8x96xf32> to vector<8xf32>
    %9 = vector.shape_cast %8 : vector<8xf32> to vector<8x1xf32>
    %cst_3 = arith.constant 9.600000e+01 : f32
    %10 = vector.broadcast %cst_3 : f32 to vector<8x1xf32>
    %11 = arith.divf %9, %10 : vector<8x1xf32>
    %cst_4 = arith.constant 9.99999974E-6 : f32
    %12 = vector.broadcast %cst_4 : f32 to vector<8x1xf32>
    %13 = arith.addf %11, %12 : vector<8x1xf32>
    %14 = math.rsqrt %13 : vector<8x1xf32>
    %cst_5 = arith.constant 9.99999974E-6 : f32
    %15 = vector.broadcast %cst_5 : f32 to vector<8x1xf32>
    %16 = arith.addf %11, %15 : vector<8x1xf32>
    %17 = arith.mulf %16, %14 : vector<8x1xf32>
    %c0_6 = arith.constant 0 : index
    %c0_7 = arith.constant 0 : index
    %18 = vector.load %arg3[%c0_6, %c0_7] : memref<96x192xf32, #tpu.memory_space<vmem>>, vector<96x192xf32>
    %cst_8 = arith.constant dense<0.000000e+00> : vector<8x192xf32>
    %19 = tpu.matmul %0, %18, %cst_8 {dimension_numbers = #tpu.dot_dimension_numbers<[1], [0], [0], [1], [0, 0, 1, 1], [], []>} : vector<8x96xf32>, vector<96x192xf32>, vector<8x192xf32> -> vector<8x192xf32>
    %20 = vector.broadcast %14 : vector<8x1xf32> to vector<8x192xf32>
    %21 = arith.mulf %20, %19 : vector<8x192xf32>
    %22 = arith.mulf %14, %4 : vector<8x1xf32>
    %c0_9 = arith.constant 0 : index
    %c0_10 = arith.constant 0 : index
    %23 = vector.load %arg4[%c0_9, %c0_10] : memref<1x192xf32, #tpu.memory_space<vmem>>, vector<1x192xf32>
    %24 = vector.broadcast %22 : vector<8x1xf32> to vector<8x192xf32>
    %25 = vector.broadcast %23 : vector<1x192xf32> to vector<8x192xf32>
    %26 = arith.mulf %24, %25 : vector<8x192xf32>
    %27 = arith.subf %21, %26 : vector<8x192xf32>
    %c0_11 = arith.constant 0 : index
    %c0_12 = arith.constant 0 : index
    %28 = vector.load %arg5[%c0_11, %c0_12] : memref<1x192xf32, #tpu.memory_space<vmem>>, vector<1x192xf32>
    %29 = vector.broadcast %28 : vector<1x192xf32> to vector<8x192xf32>
    %30 = arith.addf %27, %29 : vector<8x192xf32>
    %cst_13 = arith.constant 0.000000e+00 : f32
    %31 = vector.broadcast %cst_13 : f32 to vector<8x192xf32>
    %32 = arith.maximumf %30, %31 : vector<8x192xf32>
    %c0_14 = arith.constant 0 : index
    %c0_15 = arith.constant 0 : index
    %33 = vector.load %arg6[%c0_14, %c0_15] : memref<32x96xf32, #tpu.memory_space<vmem>>, vector<32x96xf32>
    %c0_16 = arith.constant 0 : index
    %c0_17 = arith.constant 0 : index
    %34 = vector.load %arg7[%c0_16, %c0_17] : memref<1x96xf32, #tpu.memory_space<vmem>>, vector<1x96xf32>
    %c0_18 = arith.constant 0 : index
    %c0_19 = arith.constant 0 : index
    %35 = vector.load %arg8[%c0_18, %c0_19] : memref<32x96xf32, #tpu.memory_space<vmem>>, vector<32x96xf32>
    %c0_20 = arith.constant 0 : index
    %c0_21 = arith.constant 0 : index
    %36 = vector.load %arg9[%c0_20, %c0_21] : memref<1x96xf32, #tpu.memory_space<vmem>>, vector<1x96xf32>
    %cst_22 = arith.constant 0.000000e+00 : f32
    %37 = vector.broadcast %cst_22 : f32 to vector<8x32xf32>
    %38 = vector.extract_strided_slice %32 {offsets = [0, 0], sizes = [8, 32], strides = [1, 1]} : vector<8x192xf32> to vector<8x32xf32>
    %cst_23 = arith.constant dense<0.000000e+00> : vector<8x96xf32>
    %39 = tpu.matmul %38, %33, %cst_23 {dimension_numbers = #tpu.dot_dimension_numbers<[1], [0], [0], [1], [0, 0, 1, 1], [], []>} : vector<8x32xf32>, vector<32x96xf32>, vector<8x96xf32> -> vector<8x96xf32>
    %40 = vector.broadcast %34 : vector<1x96xf32> to vector<8x96xf32>
    %41 = arith.addf %39, %40 : vector<8x96xf32>
    %cst_24 = arith.constant dense<0.000000e+00> : vector<8x96xf32>
    %42 = tpu.matmul %37, %35, %cst_24 {dimension_numbers = #tpu.dot_dimension_numbers<[1], [0], [0], [1], [0, 0, 1, 1], [], []>} : vector<8x32xf32>, vector<32x96xf32>, vector<8x96xf32> -> vector<8x96xf32>
    %43 = vector.broadcast %36 : vector<1x96xf32> to vector<8x96xf32>
    %44 = arith.addf %42, %43 : vector<8x96xf32>
    %45 = vector.extract_strided_slice %41 {offsets = [0, 0], sizes = [8, 64], strides = [1, 1]} : vector<8x96xf32> to vector<8x64xf32>
    %46 = vector.extract_strided_slice %44 {offsets = [0, 0], sizes = [8, 64], strides = [1, 1]} : vector<8x96xf32> to vector<8x64xf32>
    %47 = arith.addf %45, %46 : vector<8x64xf32>
    %48 = arith.negf %47 : vector<8x64xf32>
    %49 = math.exp %48 : vector<8x64xf32>
    %cst_25 = arith.constant 1.000000e+00 : f32
    %50 = vector.broadcast %cst_25 : f32 to vector<8x64xf32>
    %51 = arith.addf %50, %49 : vector<8x64xf32>
    %52 = arith.divf %50, %51 : vector<8x64xf32>
    %53 = vector.extract_strided_slice %52 {offsets = [0, 0], sizes = [8, 32], strides = [1, 1]} : vector<8x64xf32> to vector<8x32xf32>
    %54 = vector.extract_strided_slice %52 {offsets = [0, 32], sizes = [8, 32], strides = [1, 1]} : vector<8x64xf32> to vector<8x32xf32>
    %55 = vector.extract_strided_slice %41 {offsets = [0, 64], sizes = [8, 32], strides = [1, 1]} : vector<8x96xf32> to vector<8x32xf32>
    %56 = vector.extract_strided_slice %44 {offsets = [0, 64], sizes = [8, 32], strides = [1, 1]} : vector<8x96xf32> to vector<8x32xf32>
    %57 = arith.mulf %53, %56 : vector<8x32xf32>
    %58 = arith.addf %55, %57 : vector<8x32xf32>
    %59 = math.tanh %58 : vector<8x32xf32>
    %cst_26 = arith.constant 1.000000e+00 : f32
    %60 = vector.broadcast %cst_26 : f32 to vector<8x32xf32>
    %61 = arith.subf %60, %54 : vector<8x32xf32>
    %62 = arith.mulf %61, %59 : vector<8x32xf32>
    %63 = arith.mulf %54, %37 : vector<8x32xf32>
    %64 = arith.addf %62, %63 : vector<8x32xf32>
    %65 = vector.extract_strided_slice %32 {offsets = [0, 32], sizes = [8, 32], strides = [1, 1]} : vector<8x192xf32> to vector<8x32xf32>
    %cst_27 = arith.constant dense<0.000000e+00> : vector<8x96xf32>
    %66 = tpu.matmul %65, %33, %cst_27 {dimension_numbers = #tpu.dot_dimension_numbers<[1], [0], [0], [1], [0, 0, 1, 1], [], []>} : vector<8x32xf32>, vector<32x96xf32>, vector<8x96xf32> -> vector<8x96xf32>
    %67 = vector.broadcast %34 : vector<1x96xf32> to vector<8x96xf32>
    %68 = arith.addf %66, %67 : vector<8x96xf32>
    %cst_28 = arith.constant dense<0.000000e+00> : vector<8x96xf32>
    %69 = tpu.matmul %64, %35, %cst_28 {dimension_numbers = #tpu.dot_dimension_numbers<[1], [0], [0], [1], [0, 0, 1, 1], [], []>} : vector<8x32xf32>, vector<32x96xf32>, vector<8x96xf32> -> vector<8x96xf32>
    %70 = vector.broadcast %36 : vector<1x96xf32> to vector<8x96xf32>
    %71 = arith.addf %69, %70 : vector<8x96xf32>
    %72 = vector.extract_strided_slice %68 {offsets = [0, 0], sizes = [8, 64], strides = [1, 1]} : vector<8x96xf32> to vector<8x64xf32>
    %73 = vector.extract_strided_slice %71 {offsets = [0, 0], sizes = [8, 64], strides = [1, 1]} : vector<8x96xf32> to vector<8x64xf32>
    %74 = arith.addf %72, %73 : vector<8x64xf32>
    %75 = arith.negf %74 : vector<8x64xf32>
    %76 = math.exp %75 : vector<8x64xf32>
    %cst_29 = arith.constant 1.000000e+00 : f32
    %77 = vector.broadcast %cst_29 : f32 to vector<8x64xf32>
    %78 = arith.addf %77, %76 : vector<8x64xf32>
    %79 = arith.divf %77, %78 : vector<8x64xf32>
    %80 = vector.extract_strided_slice %79 {offsets = [0, 0], sizes = [8, 32], strides = [1, 1]} : vector<8x64xf32> to vector<8x32xf32>
    %81 = vector.extract_strided_slice %79 {offsets = [0, 32], sizes = [8, 32], strides = [1, 1]} : vector<8x64xf32> to vector<8x32xf32>
    %82 = vector.extract_strided_slice %68 {offsets = [0, 64], sizes = [8, 32], strides = [1, 1]} : vector<8x96xf32> to vector<8x32xf32>
    %83 = vector.extract_strided_slice %71 {offsets = [0, 64], sizes = [8, 32], strides = [1, 1]} : vector<8x96xf32> to vector<8x32xf32>
    %84 = arith.mulf %80, %83 : vector<8x32xf32>
    %85 = arith.addf %82, %84 : vector<8x32xf32>
    %86 = math.tanh %85 : vector<8x32xf32>
    %cst_30 = arith.constant 1.000000e+00 : f32
    %87 = vector.broadcast %cst_30 : f32 to vector<8x32xf32>
    %88 = arith.subf %87, %81 : vector<8x32xf32>
    %89 = arith.mulf %88, %86 : vector<8x32xf32>
    %90 = arith.mulf %81, %64 : vector<8x32xf32>
    %91 = arith.addf %89, %90 : vector<8x32xf32>
    %92 = vector.extract_strided_slice %32 {offsets = [0, 64], sizes = [8, 32], strides = [1, 1]} : vector<8x192xf32> to vector<8x32xf32>
    %cst_31 = arith.constant dense<0.000000e+00> : vector<8x96xf32>
    %93 = tpu.matmul %92, %33, %cst_31 {dimension_numbers = #tpu.dot_dimension_numbers<[1], [0], [0], [1], [0, 0, 1, 1], [], []>} : vector<8x32xf32>, vector<32x96xf32>, vector<8x96xf32> -> vector<8x96xf32>
    %94 = vector.broadcast %34 : vector<1x96xf32> to vector<8x96xf32>
    %95 = arith.addf %93, %94 : vector<8x96xf32>
    %cst_32 = arith.constant dense<0.000000e+00> : vector<8x96xf32>
    %96 = tpu.matmul %91, %35, %cst_32 {dimension_numbers = #tpu.dot_dimension_numbers<[1], [0], [0], [1], [0, 0, 1, 1], [], []>} : vector<8x32xf32>, vector<32x96xf32>, vector<8x96xf32> -> vector<8x96xf32>
    %97 = vector.broadcast %36 : vector<1x96xf32> to vector<8x96xf32>
    %98 = arith.addf %96, %97 : vector<8x96xf32>
    %99 = vector.extract_strided_slice %95 {offsets = [0, 0], sizes = [8, 64], strides = [1, 1]} : vector<8x96xf32> to vector<8x64xf32>
    %100 = vector.extract_strided_slice %98 {offsets = [0, 0], sizes = [8, 64], strides = [1, 1]} : vector<8x96xf32> to vector<8x64xf32>
    %101 = arith.addf %99, %100 : vector<8x64xf32>
    %102 = arith.negf %101 : vector<8x64xf32>
    %103 = math.exp %102 : vector<8x64xf32>
    %cst_33 = arith.constant 1.000000e+00 : f32
    %104 = vector.broadcast %cst_33 : f32 to vector<8x64xf32>
    %105 = arith.addf %104, %103 : vector<8x64xf32>
    %106 = arith.divf %104, %105 : vector<8x64xf32>
    %107 = vector.extract_strided_slice %106 {offsets = [0, 0], sizes = [8, 32], strides = [1, 1]} : vector<8x64xf32> to vector<8x32xf32>
    %108 = vector.extract_strided_slice %106 {offsets = [0, 32], sizes = [8, 32], strides = [1, 1]} : vector<8x64xf32> to vector<8x32xf32>
    %109 = vector.extract_strided_slice %95 {offsets = [0, 64], sizes = [8, 32], strides = [1, 1]} : vector<8x96xf32> to vector<8x32xf32>
    %110 = vector.extract_strided_slice %98 {offsets = [0, 64], sizes = [8, 32], strides = [1, 1]} : vector<8x96xf32> to vector<8x32xf32>
    %111 = arith.mulf %107, %110 : vector<8x32xf32>
    %112 = arith.addf %109, %111 : vector<8x32xf32>
    %113 = math.tanh %112 : vector<8x32xf32>
    %cst_34 = arith.constant 1.000000e+00 : f32
    %114 = vector.broadcast %cst_34 : f32 to vector<8x32xf32>
    %115 = arith.subf %114, %108 : vector<8x32xf32>
    %116 = arith.mulf %115, %113 : vector<8x32xf32>
    %117 = arith.mulf %108, %91 : vector<8x32xf32>
    %118 = arith.addf %116, %117 : vector<8x32xf32>
    %119 = vector.extract_strided_slice %32 {offsets = [0, 96], sizes = [8, 32], strides = [1, 1]} : vector<8x192xf32> to vector<8x32xf32>
    %cst_35 = arith.constant dense<0.000000e+00> : vector<8x96xf32>
    %120 = tpu.matmul %119, %33, %cst_35 {dimension_numbers = #tpu.dot_dimension_numbers<[1], [0], [0], [1], [0, 0, 1, 1], [], []>} : vector<8x32xf32>, vector<32x96xf32>, vector<8x96xf32> -> vector<8x96xf32>
    %121 = vector.broadcast %34 : vector<1x96xf32> to vector<8x96xf32>
    %122 = arith.addf %120, %121 : vector<8x96xf32>
    %cst_36 = arith.constant dense<0.000000e+00> : vector<8x96xf32>
    %123 = tpu.matmul %118, %35, %cst_36 {dimension_numbers = #tpu.dot_dimension_numbers<[1], [0], [0], [1], [0, 0, 1, 1], [], []>} : vector<8x32xf32>, vector<32x96xf32>, vector<8x96xf32> -> vector<8x96xf32>
    %124 = vector.broadcast %36 : vector<1x96xf32> to vector<8x96xf32>
    %125 = arith.addf %123, %124 : vector<8x96xf32>
    %126 = vector.extract_strided_slice %122 {offsets = [0, 0], sizes = [8, 64], strides = [1, 1]} : vector<8x96xf32> to vector<8x64xf32>
    %127 = vector.extract_strided_slice %125 {offsets = [0, 0], sizes = [8, 64], strides = [1, 1]} : vector<8x96xf32> to vector<8x64xf32>
    %128 = arith.addf %126, %127 : vector<8x64xf32>
    %129 = arith.negf %128 : vector<8x64xf32>
    %130 = math.exp %129 : vector<8x64xf32>
    %cst_37 = arith.constant 1.000000e+00 : f32
    %131 = vector.broadcast %cst_37 : f32 to vector<8x64xf32>
    %132 = arith.addf %131, %130 : vector<8x64xf32>
    %133 = arith.divf %131, %132 : vector<8x64xf32>
    %134 = vector.extract_strided_slice %133 {offsets = [0, 0], sizes = [8, 32], strides = [1, 1]} : vector<8x64xf32> to vector<8x32xf32>
    %135 = vector.extract_strided_slice %133 {offsets = [0, 32], sizes = [8, 32], strides = [1, 1]} : vector<8x64xf32> to vector<8x32xf32>
    %136 = vector.extract_strided_slice %122 {offsets = [0, 64], sizes = [8, 32], strides = [1, 1]} : vector<8x96xf32> to vector<8x32xf32>
    %137 = vector.extract_strided_slice %125 {offsets = [0, 64], sizes = [8, 32], strides = [1, 1]} : vector<8x96xf32> to vector<8x32xf32>
    %138 = arith.mulf %134, %137 : vector<8x32xf32>
    %139 = arith.addf %136, %138 : vector<8x32xf32>
    %140 = math.tanh %139 : vector<8x32xf32>
    %cst_38 = arith.constant 1.000000e+00 : f32
    %141 = vector.broadcast %cst_38 : f32 to vector<8x32xf32>
    %142 = arith.subf %141, %135 : vector<8x32xf32>
    %143 = arith.mulf %142, %140 : vector<8x32xf32>
    %144 = arith.mulf %135, %118 : vector<8x32xf32>
    %145 = arith.addf %143, %144 : vector<8x32xf32>
    %146 = vector.extract_strided_slice %32 {offsets = [0, 128], sizes = [8, 32], strides = [1, 1]} : vector<8x192xf32> to vector<8x32xf32>
    %cst_39 = arith.constant dense<0.000000e+00> : vector<8x96xf32>
    %147 = tpu.matmul %146, %33, %cst_39 {dimension_numbers = #tpu.dot_dimension_numbers<[1], [0], [0], [1], [0, 0, 1, 1], [], []>} : vector<8x32xf32>, vector<32x96xf32>, vector<8x96xf32> -> vector<8x96xf32>
    %148 = vector.broadcast %34 : vector<1x96xf32> to vector<8x96xf32>
    %149 = arith.addf %147, %148 : vector<8x96xf32>
    %cst_40 = arith.constant dense<0.000000e+00> : vector<8x96xf32>
    %150 = tpu.matmul %145, %35, %cst_40 {dimension_numbers = #tpu.dot_dimension_numbers<[1], [0], [0], [1], [0, 0, 1, 1], [], []>} : vector<8x32xf32>, vector<32x96xf32>, vector<8x96xf32> -> vector<8x96xf32>
    %151 = vector.broadcast %36 : vector<1x96xf32> to vector<8x96xf32>
    %152 = arith.addf %150, %151 : vector<8x96xf32>
    %153 = vector.extract_strided_slice %149 {offsets = [0, 0], sizes = [8, 64], strides = [1, 1]} : vector<8x96xf32> to vector<8x64xf32>
    %154 = vector.extract_strided_slice %152 {offsets = [0, 0], sizes = [8, 64], strides = [1, 1]} : vector<8x96xf32> to vector<8x64xf32>
    %155 = arith.addf %153, %154 : vector<8x64xf32>
    %156 = arith.negf %155 : vector<8x64xf32>
    %157 = math.exp %156 : vector<8x64xf32>
    %cst_41 = arith.constant 1.000000e+00 : f32
    %158 = vector.broadcast %cst_41 : f32 to vector<8x64xf32>
    %159 = arith.addf %158, %157 : vector<8x64xf32>
    %160 = arith.divf %158, %159 : vector<8x64xf32>
    %161 = vector.extract_strided_slice %160 {offsets = [0, 0], sizes = [8, 32], strides = [1, 1]} : vector<8x64xf32> to vector<8x32xf32>
    %162 = vector.extract_strided_slice %160 {offsets = [0, 32], sizes = [8, 32], strides = [1, 1]} : vector<8x64xf32> to vector<8x32xf32>
    %163 = vector.extract_strided_slice %149 {offsets = [0, 64], sizes = [8, 32], strides = [1, 1]} : vector<8x96xf32> to vector<8x32xf32>
    %164 = vector.extract_strided_slice %152 {offsets = [0, 64], sizes = [8, 32], strides = [1, 1]} : vector<8x96xf32> to vector<8x32xf32>
    %165 = arith.mulf %161, %164 : vector<8x32xf32>
    %166 = arith.addf %163, %165 : vector<8x32xf32>
    %167 = math.tanh %166 : vector<8x32xf32>
    %cst_42 = arith.constant 1.000000e+00 : f32
    %168 = vector.broadcast %cst_42 : f32 to vector<8x32xf32>
    %169 = arith.subf %168, %162 : vector<8x32xf32>
    %170 = arith.mulf %169, %167 : vector<8x32xf32>
    %171 = arith.mulf %162, %145 : vector<8x32xf32>
    %172 = arith.addf %170, %171 : vector<8x32xf32>
    %173 = vector.extract_strided_slice %32 {offsets = [0, 160], sizes = [8, 32], strides = [1, 1]} : vector<8x192xf32> to vector<8x32xf32>
    %cst_43 = arith.constant dense<0.000000e+00> : vector<8x96xf32>
    %174 = tpu.matmul %173, %33, %cst_43 {dimension_numbers = #tpu.dot_dimension_numbers<[1], [0], [0], [1], [0, 0, 1, 1], [], []>} : vector<8x32xf32>, vector<32x96xf32>, vector<8x96xf32> -> vector<8x96xf32>
    %175 = vector.broadcast %34 : vector<1x96xf32> to vector<8x96xf32>
    %176 = arith.addf %174, %175 : vector<8x96xf32>
    %cst_44 = arith.constant dense<0.000000e+00> : vector<8x96xf32>
    %177 = tpu.matmul %172, %35, %cst_44 {dimension_numbers = #tpu.dot_dimension_numbers<[1], [0], [0], [1], [0, 0, 1, 1], [], []>} : vector<8x32xf32>, vector<32x96xf32>, vector<8x96xf32> -> vector<8x96xf32>
    %178 = vector.broadcast %36 : vector<1x96xf32> to vector<8x96xf32>
    %179 = arith.addf %177, %178 : vector<8x96xf32>
    %180 = vector.extract_strided_slice %176 {offsets = [0, 0], sizes = [8, 64], strides = [1, 1]} : vector<8x96xf32> to vector<8x64xf32>
    %181 = vector.extract_strided_slice %179 {offsets = [0, 0], sizes = [8, 64], strides = [1, 1]} : vector<8x96xf32> to vector<8x64xf32>
    %182 = arith.addf %180, %181 : vector<8x64xf32>
    %183 = arith.negf %182 : vector<8x64xf32>
    %184 = math.exp %183 : vector<8x64xf32>
    %cst_45 = arith.constant 1.000000e+00 : f32
    %185 = vector.broadcast %cst_45 : f32 to vector<8x64xf32>
    %186 = arith.addf %185, %184 : vector<8x64xf32>
    %187 = arith.divf %185, %186 : vector<8x64xf32>
    %188 = vector.extract_strided_slice %187 {offsets = [0, 0], sizes = [8, 32], strides = [1, 1]} : vector<8x64xf32> to vector<8x32xf32>
    %189 = vector.extract_strided_slice %187 {offsets = [0, 32], sizes = [8, 32], strides = [1, 1]} : vector<8x64xf32> to vector<8x32xf32>
    %190 = vector.extract_strided_slice %176 {offsets = [0, 64], sizes = [8, 32], strides = [1, 1]} : vector<8x96xf32> to vector<8x32xf32>
    %191 = vector.extract_strided_slice %179 {offsets = [0, 64], sizes = [8, 32], strides = [1, 1]} : vector<8x96xf32> to vector<8x32xf32>
    %192 = arith.mulf %188, %191 : vector<8x32xf32>
    %193 = arith.addf %190, %192 : vector<8x32xf32>
    %194 = math.tanh %193 : vector<8x32xf32>
    %cst_46 = arith.constant 1.000000e+00 : f32
    %195 = vector.broadcast %cst_46 : f32 to vector<8x32xf32>
    %196 = arith.subf %195, %189 : vector<8x32xf32>
    %197 = arith.mulf %196, %194 : vector<8x32xf32>
    %198 = arith.mulf %189, %172 : vector<8x32xf32>
    %199 = arith.addf %197, %198 : vector<8x32xf32>
    %c0_47 = arith.constant 0 : index
    %c0_48 = arith.constant 0 : index
    %200 = vector.load %arg2[%c0_47, %c0_48] : memref<8x64xf32, #tpu.memory_space<vmem>>, vector<8x64xf32>
    %c0_49 = arith.constant 0 : index
    %c0_50 = arith.constant 0 : index
    %201 = vector.load %arg10[%c0_49, %c0_50] : memref<32x16xf32, #tpu.memory_space<vmem>>, vector<32x16xf32>
    %c0_51 = arith.constant 0 : index
    %c0_52 = arith.constant 0 : index
    %202 = vector.load %arg11[%c0_51, %c0_52] : memref<1x16xf32, #tpu.memory_space<vmem>>, vector<1x16xf32>
    %203 = vector.extract_strided_slice %200 {offsets = [0, 0], sizes = [8, 32], strides = [1, 1]} : vector<8x64xf32> to vector<8x32xf32>
    %cst_53 = arith.constant dense<0.000000e+00> : vector<8x96xf32>
    %204 = tpu.matmul %203, %33, %cst_53 {dimension_numbers = #tpu.dot_dimension_numbers<[1], [0], [0], [1], [0, 0, 1, 1], [], []>} : vector<8x32xf32>, vector<32x96xf32>, vector<8x96xf32> -> vector<8x96xf32>
    %205 = vector.broadcast %34 : vector<1x96xf32> to vector<8x96xf32>
    %206 = arith.addf %204, %205 : vector<8x96xf32>
    %cst_54 = arith.constant dense<0.000000e+00> : vector<8x96xf32>
    %207 = tpu.matmul %199, %35, %cst_54 {dimension_numbers = #tpu.dot_dimension_numbers<[1], [0], [0], [1], [0, 0, 1, 1], [], []>} : vector<8x32xf32>, vector<32x96xf32>, vector<8x96xf32> -> vector<8x96xf32>
    %208 = vector.broadcast %36 : vector<1x96xf32> to vector<8x96xf32>
    %209 = arith.addf %207, %208 : vector<8x96xf32>
    %210 = vector.extract_strided_slice %206 {offsets = [0, 0], sizes = [8, 64], strides = [1, 1]} : vector<8x96xf32> to vector<8x64xf32>
    %211 = vector.extract_strided_slice %209 {offsets = [0, 0], sizes = [8, 64], strides = [1, 1]} : vector<8x96xf32> to vector<8x64xf32>
    %212 = arith.addf %210, %211 : vector<8x64xf32>
    %213 = arith.negf %212 : vector<8x64xf32>
    %214 = math.exp %213 : vector<8x64xf32>
    %cst_55 = arith.constant 1.000000e+00 : f32
    %215 = vector.broadcast %cst_55 : f32 to vector<8x64xf32>
    %216 = arith.addf %215, %214 : vector<8x64xf32>
    %217 = arith.divf %215, %216 : vector<8x64xf32>
    %218 = vector.extract_strided_slice %217 {offsets = [0, 0], sizes = [8, 32], strides = [1, 1]} : vector<8x64xf32> to vector<8x32xf32>
    %219 = vector.extract_strided_slice %217 {offsets = [0, 32], sizes = [8, 32], strides = [1, 1]} : vector<8x64xf32> to vector<8x32xf32>
    %220 = vector.extract_strided_slice %206 {offsets = [0, 64], sizes = [8, 32], strides = [1, 1]} : vector<8x96xf32> to vector<8x32xf32>
    %221 = vector.extract_strided_slice %209 {offsets = [0, 64], sizes = [8, 32], strides = [1, 1]} : vector<8x96xf32> to vector<8x32xf32>
    %222 = arith.mulf %218, %221 : vector<8x32xf32>
    %223 = arith.addf %220, %222 : vector<8x32xf32>
    %224 = math.tanh %223 : vector<8x32xf32>
    %cst_56 = arith.constant 1.000000e+00 : f32
    %225 = vector.broadcast %cst_56 : f32 to vector<8x32xf32>
    %226 = arith.subf %225, %219 : vector<8x32xf32>
    %227 = arith.mulf %226, %224 : vector<8x32xf32>
    %228 = arith.mulf %219, %199 : vector<8x32xf32>
    %229 = arith.addf %227, %228 : vector<8x32xf32>
    %cst_57 = arith.constant dense<0.000000e+00> : vector<8x16xf32>
    %230 = tpu.matmul %229, %201, %cst_57 {dimension_numbers = #tpu.dot_dimension_numbers<[1], [0], [0], [1], [0, 0, 1, 1], [], []>} : vector<8x32xf32>, vector<32x16xf32>, vector<8x16xf32> -> vector<8x16xf32>
    %231 = vector.broadcast %202 : vector<1x16xf32> to vector<8x16xf32>
    %232 = arith.addf %230, %231 : vector<8x16xf32>
    %233 = vector.broadcast %17 : vector<8x1xf32> to vector<8x16xf32>
    %234 = arith.mulf %232, %233 : vector<8x16xf32>
    %235 = vector.broadcast %4 : vector<8x1xf32> to vector<8x16xf32>
    %236 = arith.addf %234, %235 : vector<8x16xf32>
    %237 = vector.extract_strided_slice %200 {offsets = [0, 32], sizes = [8, 32], strides = [1, 1]} : vector<8x64xf32> to vector<8x32xf32>
    %cst_58 = arith.constant dense<0.000000e+00> : vector<8x96xf32>
    %238 = tpu.matmul %237, %33, %cst_58 {dimension_numbers = #tpu.dot_dimension_numbers<[1], [0], [0], [1], [0, 0, 1, 1], [], []>} : vector<8x32xf32>, vector<32x96xf32>, vector<8x96xf32> -> vector<8x96xf32>
    %239 = vector.broadcast %34 : vector<1x96xf32> to vector<8x96xf32>
    %240 = arith.addf %238, %239 : vector<8x96xf32>
    %cst_59 = arith.constant dense<0.000000e+00> : vector<8x96xf32>
    %241 = tpu.matmul %199, %35, %cst_59 {dimension_numbers = #tpu.dot_dimension_numbers<[1], [0], [0], [1], [0, 0, 1, 1], [], []>} : vector<8x32xf32>, vector<32x96xf32>, vector<8x96xf32> -> vector<8x96xf32>
    %242 = vector.broadcast %36 : vector<1x96xf32> to vector<8x96xf32>
    %243 = arith.addf %241, %242 : vector<8x96xf32>
    %244 = vector.extract_strided_slice %240 {offsets = [0, 0], sizes = [8, 64], strides = [1, 1]} : vector<8x96xf32> to vector<8x64xf32>
    %245 = vector.extract_strided_slice %243 {offsets = [0, 0], sizes = [8, 64], strides = [1, 1]} : vector<8x96xf32> to vector<8x64xf32>
    %246 = arith.addf %244, %245 : vector<8x64xf32>
    %247 = arith.negf %246 : vector<8x64xf32>
    %248 = math.exp %247 : vector<8x64xf32>
    %cst_60 = arith.constant 1.000000e+00 : f32
    %249 = vector.broadcast %cst_60 : f32 to vector<8x64xf32>
    %250 = arith.addf %249, %248 : vector<8x64xf32>
    %251 = arith.divf %249, %250 : vector<8x64xf32>
    %252 = vector.extract_strided_slice %251 {offsets = [0, 0], sizes = [8, 32], strides = [1, 1]} : vector<8x64xf32> to vector<8x32xf32>
    %253 = vector.extract_strided_slice %251 {offsets = [0, 32], sizes = [8, 32], strides = [1, 1]} : vector<8x64xf32> to vector<8x32xf32>
    %254 = vector.extract_strided_slice %240 {offsets = [0, 64], sizes = [8, 32], strides = [1, 1]} : vector<8x96xf32> to vector<8x32xf32>
    %255 = vector.extract_strided_slice %243 {offsets = [0, 64], sizes = [8, 32], strides = [1, 1]} : vector<8x96xf32> to vector<8x32xf32>
    %256 = arith.mulf %252, %255 : vector<8x32xf32>
    %257 = arith.addf %254, %256 : vector<8x32xf32>
    %258 = math.tanh %257 : vector<8x32xf32>
    %cst_61 = arith.constant 1.000000e+00 : f32
    %259 = vector.broadcast %cst_61 : f32 to vector<8x32xf32>
    %260 = arith.subf %259, %253 : vector<8x32xf32>
    %261 = arith.mulf %260, %258 : vector<8x32xf32>
    %262 = arith.mulf %253, %199 : vector<8x32xf32>
    %263 = arith.addf %261, %262 : vector<8x32xf32>
    %cst_62 = arith.constant dense<0.000000e+00> : vector<8x16xf32>
    %264 = tpu.matmul %263, %201, %cst_62 {dimension_numbers = #tpu.dot_dimension_numbers<[1], [0], [0], [1], [0, 0, 1, 1], [], []>} : vector<8x32xf32>, vector<32x16xf32>, vector<8x16xf32> -> vector<8x16xf32>
    %265 = vector.broadcast %202 : vector<1x16xf32> to vector<8x16xf32>
    %266 = arith.addf %264, %265 : vector<8x16xf32>
    %267 = vector.broadcast %17 : vector<8x1xf32> to vector<8x16xf32>
    %268 = arith.mulf %266, %267 : vector<8x16xf32>
    %269 = vector.broadcast %4 : vector<8x1xf32> to vector<8x16xf32>
    %270 = arith.addf %268, %269 : vector<8x16xf32>
    %271 = tpu.concatenate %236, %270 in 1 : vector<8x16xf32>, vector<8x16xf32> -> vector<8x32xf32>
    %c0_63 = arith.constant 0 : index
    %c0_64 = arith.constant 0 : index
    %272 = vector.load %arg12[%c0_63, %c0_64] : memref<8x32xf32, #tpu.memory_space<vmem>>, vector<8x32xf32>
    tpu.vector_store %arg12[%c0_63, %c0_64], %271 {strides = array<i32>} : memref<8x32xf32, #tpu.memory_space<vmem>>, vector<8x32xf32>,
    return
  }
  func.func @transform_0(%arg0: i32) -> (i32, i32) {
    %c0_i32 = arith.constant 0 : i32
    %c0_i32_0 = arith.constant 0 : i32
    return %arg0, %c0_i32 : i32, i32
  }
  func.func @transform_1(%arg0: i32) -> (i32, i32) {
    %c0_i32 = arith.constant 0 : i32
    %c0_i32_0 = arith.constant 0 : i32
    return %arg0, %c0_i32 : i32, i32
  }
  func.func @transform_2(%arg0: i32) -> (i32, i32) {
    %c0_i32 = arith.constant 0 : i32
    %c0_i32_0 = arith.constant 0 : i32
    %c0_i32_1 = arith.constant 0 : i32
    return %c0_i32, %c0_i32_0 : i32, i32
  }
  func.func @transform_3(%arg0: i32) -> (i32, i32) {
    %c0_i32 = arith.constant 0 : i32
    %c0_i32_0 = arith.constant 0 : i32
    %c0_i32_1 = arith.constant 0 : i32
    return %c0_i32, %c0_i32_0 : i32, i32
  }
  func.func @transform_4(%arg0: i32) -> (i32, i32) {
    %c0_i32 = arith.constant 0 : i32
    %c0_i32_0 = arith.constant 0 : i32
    %c0_i32_1 = arith.constant 0 : i32
    return %c0_i32, %c0_i32_0 : i32, i32
  }
  func.func @transform_5(%arg0: i32) -> (i32, i32) {
    %c0_i32 = arith.constant 0 : i32
    %c0_i32_0 = arith.constant 0 : i32
    %c0_i32_1 = arith.constant 0 : i32
    return %c0_i32, %c0_i32_0 : i32, i32
  }
  func.func @transform_6(%arg0: i32) -> (i32, i32) {
    %c0_i32 = arith.constant 0 : i32
    %c0_i32_0 = arith.constant 0 : i32
    %c0_i32_1 = arith.constant 0 : i32
    return %c0_i32, %c0_i32_0 : i32, i32
  }
  func.func @transform_7(%arg0: i32) -> (i32, i32) {
    %c0_i32 = arith.constant 0 : i32
    %c0_i32_0 = arith.constant 0 : i32
    %c0_i32_1 = arith.constant 0 : i32
    return %c0_i32, %c0_i32_0 : i32, i32
  }
  func.func @transform_8(%arg0: i32) -> (i32, i32) {
    %c0_i32 = arith.constant 0 : i32
    %c0_i32_0 = arith.constant 0 : i32
    %c0_i32_1 = arith.constant 0 : i32
    return %c0_i32, %c0_i32_0 : i32, i32
  }
  func.func @transform_9(%arg0: i32) -> (i32, i32) {
    %c0_i32 = arith.constant 0 : i32
    %c0_i32_0 = arith.constant 0 : i32
    %c0_i32_1 = arith.constant 0 : i32
    return %c0_i32, %c0_i32_0 : i32, i32
  }
  func.func @transform_10(%arg0: i32) -> (i32, i32) {
    %c0_i32 = arith.constant 0 : i32
    %c0_i32_0 = arith.constant 0 : i32
    %c0_i32_1 = arith.constant 0 : i32
    return %c0_i32, %c0_i32_0 : i32, i32
  }
  func.func @transform_11(%arg0: i32) -> (i32, i32) {
    %c0_i32 = arith.constant 0 : i32
    %c0_i32_0 = arith.constant 0 : i32
    return %arg0, %c0_i32 : i32, i32
  }
}

</mosaic_0001>

<llo_original>
// kernel: tpu_custom_call.1
$region0: #{tpu_custom_call.1}
  #allocation0 [shape = 'u32[]', space=smem, size = 0x4, offset = 0x4, fixed_abs, tag = 'smem constant byte address 0x4 - core index']
  #allocation1 [shape = 'u32[144,128]{1,0:T(1,128)}', space=vmem, size = 0x12000, scoped, tag = 'internal scratch']
  %s0 = inlined_call_operand.hbm [shape: f32[16,96], index: 0, kind: input, shape index: {}]
  %s1 = inlined_call_operand.hbm [shape: f32[16,64], index: 1, kind: input, shape index: {}]
  %s2 = inlined_call_operand.hbm [shape: f32[96,192], index: 2, kind: input, shape index: {}]
  %s3 = inlined_call_operand.vmem [shape: f32[1,192], index: 3, kind: input, shape index: {}]
  %s4 = inlined_call_operand.hbm [shape: f32[1,192], index: 4, kind: input, shape index: {}]
  %s5 = inlined_call_operand.vmem [shape: f32[32,96], index: 5, kind: input, shape index: {}]
  %s6 = inlined_call_operand.hbm [shape: f32[1,96], index: 6, kind: input, shape index: {}]
  %s7 = inlined_call_operand.vmem [shape: f32[32,96], index: 7, kind: input, shape index: {}]
  %s8 = inlined_call_operand.hbm [shape: f32[1,96], index: 8, kind: input, shape index: {}]
  %s9 = inlined_call_operand.vmem [shape: f32[32,16], index: 9, kind: input, shape index: {}]
  %s10 = inlined_call_operand.vmem [shape: f32[1,16], index: 10, kind: input, shape index: {}]
  %s11 = inlined_call_operand.hbm [shape: f32[16,32], index: 11, kind: output, shape index: {}]
  %s12 = sld [smem:[#allocation0]]
  $region101: #{tpu_custom_call.1} parent=0
    _
  %s14 = ssub.s32 1, %s12
  %s15 = scalar_select 0, %s14, %s12
  $region1: #{tpu_custom_call.1} parent=0
    #allocation2 [shape = 'u8[8192]{0}', space=vmem, size = 0x2000, scoped, tag = 'input window, operand 0']
    #allocation3 [shape = 's32[2]{0}', space=sflag, size = 0x8, scoped, tag = 'scoped memory for tpu_custom_call.1']
    #allocation4 [shape = 's32[2]{0}', space=sflag, size = 0x8, scoped, tag = 'scoped memory for tpu_custom_call.1']
    #allocation5 [shape = 'u8[8192]{0}', space=vmem, size = 0x2000, scoped, tag = 'input window, operand 1']
    #allocation6 [shape = 's32[2]{0}', space=sflag, size = 0x8, scoped, tag = 'scoped memory for tpu_custom_call.1']
    #allocation7 [shape = 'u8[98304]{0}', space=vmem, size = 0x18000, scoped, tag = 'input window, operand 2, single buffered']
    #allocation8 [shape = 'u8[1024]{0}', space=vmem, size = 0x400, scoped, tag = 'input window, operand 4, single buffered']
    #allocation9 [shape = 's32[1]{0}', space=sflag, size = 0x4, scoped, tag = 'scoped memory for tpu_custom_call.1']
    #allocation10 [shape = 'u8[512]{0}', space=vmem, size = 0x400, scoped, tag = 'input window, operand 6, single buffered']
    #allocation11 [shape = 'u8[512]{0}', space=vmem, size = 0x400, scoped, tag = 'input window, operand 8, single buffered']
    #allocation12 [shape = 's32[1]{0}', space=sflag, size = 0x4, scoped, tag = 'scoped memory for tpu_custom_call.1']
    #allocation13 [shape = 'u8[8192]{0}', space=vmem, size = 0x2000, scoped, tag = 'output window, operand 0']
    %16 = vsyncpa [#allocation3], 0
    %s17 = scalar_lea.sflag [#allocation3], 1
    %18 = vsyncpa %s17, 0
    %19 = vsyncpa [#allocation6], 0
    %s20 = scalar_lea.sflag [#allocation6], 1
    %21 = vsyncpa %s20, 0
    %22 = vsyncpa [#allocation9], 0
    %23 = vsyncpa [#allocation12], 0
    %24 = vsyncpa [#allocation4], 0
    %s25 = scalar_lea.sflag [#allocation4], 1
    %26 = vsyncpa %s25, 0
    loop: start=0, step=1, limit=4
    $region2: #{tpu_custom_call.1} parent=1 // loop_pre_header
      _
    $region3: #{tpu_custom_call.1} parent=1 // loop_header
      %s28 = sphi 0, %s32
      %p29 = scmp.ge.s32.totalorder %s28, 4
      %s38 = sphi 0, %s40
      %s41 = sphi 0, %s38
      %s42 = sphi 0, %s41
      %s58 = sphi 0, %s42
      %s64 = sphi 0, %s66
      %s67 = sphi 0, %s64
      %s68 = sphi 0, %s67
      %s84 = sphi 0, %s68
      %s88 = sphi 0, %s88
      %s90 = sphi 0, %s88
      %s91 = sphi 0, %s90
      %s105 = sphi 0, %s91
      %s109 = sphi 0, %s109
      %s111 = sphi 0, %s109
      %s112 = sphi 0, %s111
      %s126 = sphi 0, %s112
      %s130 = sphi 0, %s130
      %s132 = sphi 0, %s130
      %s133 = sphi 0, %s132
      %s147 = sphi 0, %s133
      %s151 = sphi 0, %s151
      %s153 = sphi 0, %s151
      %s154 = sphi 0, %s153
      %s168 = sphi 0, %s154
      %s172 = sphi 0, %s172
      %s174 = sphi 0, %s172
      %s175 = sphi 0, %s174
      %s189 = sphi 0, %s175
      %s193 = sphi 0, %s193
      %s195 = sphi 0, %s193
      %s196 = sphi 0, %s195
      %s210 = sphi 0, %s196
      %s214 = sphi 0, %s214
      %s216 = sphi 0, %s214
      %s217 = sphi 0, %s216
      %s231 = sphi 0, %s217
      %s235 = sphi 0, %s235
      %s237 = sphi 0, %s235
      %s238 = sphi 0, %s237
      %s252 = sphi 0, %s238
      %s256 = sphi 0, %s256
      %s258 = sphi 0, %s256
      %s259 = sphi 0, %s258
      %s273 = sphi 0, %s259
      %s279 = sphi 0, %s281
      %s282 = sphi 0, %s279
      %s283 = sphi 0, %s282
      %s299 = sphi 0, %s283
    $region4: #{tpu_custom_call.1} parent=1 // loop_header_branch
      %31 = sbr.rel (%p29) target = $region8
    $region5: #{tpu_custom_call.1} parent=1 // loop_body
      %s33 = ssub.s32 %s28, 1
      %s34 = ssub.s32 %s28, 2
      %s35 = sadd.s32 %s28, 1
      %s36 = ssub.s32 %s28, %s35
      %p37 = scmp.eq.s32.totalorder %s36, 0
      %s39 = sadd.s32 %s38, 1
      %s40 = scalar_select %p37, %s38, %s39
      %p43 = pneg %p37
      %p44 = scmp.eq.s32.totalorder %s28, 1
      %p45 = por %p43, %p44
      %p46 = scmp.ne.s32.totalorder %s38, %s41
      %p47 = scmp.eq.s32.totalorder %s28, 0
      %p48 = por %p46, %p47
      %p49 = scmp.ne.s32.totalorder %s38, %s41
      %p50 = scmp.eq.s32.totalorder %s33, 1
      %p51 = por %p49, %p50
      %p52 = scmp.ne.s32.totalorder %s41, %s42
      %p53 = scmp.eq.s32.totalorder %s33, 0
      %p54 = por %p52, %p53
      %p55 = scmp.ne.s32.totalorder %s41, %s42
      %p56 = scmp.eq.s32.totalorder %s34, 1
      %p57 = por %p55, %p56
      %p59 = scmp.ne.s32.totalorder %s42, %s58
      %p60 = scmp.eq.s32.totalorder %s34, 0
      %p61 = por %p59, %p60
      %s62 = ssub.s32 %s28, %s35
      %p63 = scmp.eq.s32.totalorder %s62, 0
      %s65 = sadd.s32 %s64, 1
      %s66 = scalar_select %p63, %s64, %s65
      %p69 = pneg %p63
      %p70 = scmp.eq.s32.totalorder %s28, 1
      %p71 = por %p69, %p70
      %p72 = scmp.ne.s32.totalorder %s64, %s67
      %p73 = scmp.eq.s32.totalorder %s28, 0
      %p74 = por %p72, %p73
      %p75 = scmp.ne.s32.totalorder %s64, %s67
      %p76 = scmp.eq.s32.totalorder %s33, 1
      %p77 = por %p75, %p76
      %p78 = scmp.ne.s32.totalorder %s67, %s68
      %p79 = scmp.eq.s32.totalorder %s33, 0
      %p80 = por %p78, %p79
      %p81 = scmp.ne.s32.totalorder %s67, %s68
      %p82 = scmp.eq.s32.totalorder %s34, 1
      %p83 = por %p81, %p82
      %p85 = scmp.ne.s32.totalorder %s68, %s84
      %p86 = scmp.eq.s32.totalorder %s34, 0
      %p87 = por %p85, %p86
      %s89 = sadd.s32 %s88, 1
      %p92 = scmp.eq.s32.totalorder %s28, 1
      %p93 = scmp.ne.s32.totalorder %s88, %s90
      %p94 = scmp.eq.s32.totalorder %s28, 0
      %p95 = por %p93, %p94
      %p96 = scmp.ne.s32.totalorder %s88, %s90
      %p97 = scmp.eq.s32.totalorder %s33, 1
      %p98 = por %p96, %p97
      %p99 = scmp.ne.s32.totalorder %s90, %s91
      %p100 = scmp.eq.s32.totalorder %s33, 0
      %p101 = por %p99, %p100
      %p102 = scmp.ne.s32.totalorder %s90, %s91
      %p103 = scmp.eq.s32.totalorder %s34, 1
      %p104 = por %p102, %p103
      %p106 = scmp.ne.s32.totalorder %s91, %s105
      %p107 = scmp.eq.s32.totalorder %s34, 0
      %p108 = por %p106, %p107
      %s110 = sadd.s32 %s109, 1
      %p113 = scmp.eq.s32.totalorder %s28, 1
      %p114 = scmp.ne.s32.totalorder %s109, %s111
      %p115 = scmp.eq.s32.totalorder %s28, 0
      %p116 = por %p114, %p115
      %p117 = scmp.ne.s32.totalorder %s109, %s111
      %p118 = scmp.eq.s32.totalorder %s33, 1
      %p119 = por %p117, %p118
      %p120 = scmp.ne.s32.totalorder %s111, %s112
      %p121 = scmp.eq.s32.totalorder %s33, 0
      %p122 = por %p120, %p121
      %p123 = scmp.ne.s32.totalorder %s111, %s112
      %p124 = scmp.eq.s32.totalorder %s34, 1
      %p125 = por %p123, %p124
      %p127 = scmp.ne.s32.totalorder %s112, %s126
      %p128 = scmp.eq.s32.totalorder %s34, 0
      %p129 = por %p127, %p128
      %s131 = sadd.s32 %s130, 1
      %p134 = scmp.eq.s32.totalorder %s28, 1
      %p135 = scmp.ne.s32.totalorder %s130, %s132
      %p136 = scmp.eq.s32.totalorder %s28, 0
      %p137 = por %p135, %p136
      %p138 = scmp.ne.s32.totalorder %s130, %s132
      %p139 = scmp.eq.s32.totalorder %s33, 1
      %p140 = por %p138, %p139
      %p141 = scmp.ne.s32.totalorder %s132, %s133
      %p142 = scmp.eq.s32.totalorder %s33, 0
      %p143 = por %p141, %p142
      %p144 = scmp.ne.s32.totalorder %s132, %s133
      %p145 = scmp.eq.s32.totalorder %s34, 1
      %p146 = por %p144, %p145
      %p148 = scmp.ne.s32.totalorder %s133, %s147
      %p149 = scmp.eq.s32.totalorder %s34, 0
      %p150 = por %p148, %p149
      %s152 = sadd.s32 %s151, 1
      %p155 = scmp.eq.s32.totalorder %s28, 1
      %p156 = scmp.ne.s32.totalorder %s151, %s153
      %p157 = scmp.eq.s32.totalorder %s28, 0
      %p158 = por %p156, %p157
      %p159 = scmp.ne.s32.totalorder %s151, %s153
      %p160 = scmp.eq.s32.totalorder %s33, 1
      %p161 = por %p159, %p160
      %p162 = scmp.ne.s32.totalorder %s153, %s154
      %p163 = scmp.eq.s32.totalorder %s33, 0
      %p164 = por %p162, %p163
      %p165 = scmp.ne.s32.totalorder %s153, %s154
      %p166 = scmp.eq.s32.totalorder %s34, 1
      %p167 = por %p165, %p166
      %p169 = scmp.ne.s32.totalorder %s154, %s168
      %p170 = scmp.eq.s32.totalorder %s34, 0
      %p171 = por %p169, %p170
      %s173 = sadd.s32 %s172, 1
      %p176 = scmp.eq.s32.totalorder %s28, 1
      %p177 = scmp.ne.s32.totalorder %s172, %s174
      %p178 = scmp.eq.s32.totalorder %s28, 0
      %p179 = por %p177, %p178
      %p180 = scmp.ne.s32.totalorder %s172, %s174
      %p181 = scmp.eq.s32.totalorder %s33, 1
      %p182 = por %p180, %p181
      %p183 = scmp.ne.s32.totalorder %s174, %s175
      %p184 = scmp.eq.s32.totalorder %s33, 0
      %p185 = por %p183, %p184
      %p186 = scmp.ne.s32.totalorder %s174, %s175
      %p187 = scmp.eq.s32.totalorder %s34, 1
      %p188 = por %p186, %p187
      %p190 = scmp.ne.s32.totalorder %s175, %s189
      %p191 = scmp.eq.s32.totalorder %s34, 0
      %p192 = por %p190, %p191
      %s194 = sadd.s32 %s193, 1
      %p197 = scmp.eq.s32.totalorder %s28, 1
      %p198 = scmp.ne.s32.totalorder %s193, %s195
      %p199 = scmp.eq.s32.totalorder %s28, 0
      %p200 = por %p198, %p199
      %p201 = scmp.ne.s32.totalorder %s193, %s195
      %p202 = scmp.eq.s32.totalorder %s33, 1
      %p203 = por %p201, %p202
      %p204 = scmp.ne.s32.totalorder %s195, %s196
      %p205 = scmp.eq.s32.totalorder %s33, 0
      %p206 = por %p204, %p205
      %p207 = scmp.ne.s32.totalorder %s195, %s196
      %p208 = scmp.eq.s32.totalorder %s34, 1
      %p209 = por %p207, %p208
      %p211 = scmp.ne.s32.totalorder %s196, %s210
      %p212 = scmp.eq.s32.totalorder %s34, 0
      %p213 = por %p211, %p212
      %s215 = sadd.s32 %s214, 1
      %p218 = scmp.eq.s32.totalorder %s28, 1
      %p219 = scmp.ne.s32.totalorder %s214, %s216
      %p220 = scmp.eq.s32.totalorder %s28, 0
      %p221 = por %p219, %p220
      %p222 = scmp.ne.s32.totalorder %s214, %s216
      %p223 = scmp.eq.s32.totalorder %s33, 1
      %p224 = por %p222, %p223
      %p225 = scmp.ne.s32.totalorder %s216, %s217
      %p226 = scmp.eq.s32.totalorder %s33, 0
      %p227 = por %p225, %p226
      %p228 = scmp.ne.s32.totalorder %s216, %s217
      %p229 = scmp.eq.s32.totalorder %s34, 1
      %p230 = por %p228, %p229
      %p232 = scmp.ne.s32.totalorder %s217, %s231
      %p233 = scmp.eq.s32.totalorder %s34, 0
      %p234 = por %p232, %p233
      %s236 = sadd.s32 %s235, 1
      %p239 = scmp.eq.s32.totalorder %s28, 1
      %p240 = scmp.ne.s32.totalorder %s235, %s237
      %p241 = scmp.eq.s32.totalorder %s28, 0
      %p242 = por %p240, %p241
      %p243 = scmp.ne.s32.totalorder %s235, %s237
      %p244 = scmp.eq.s32.totalorder %s33, 1
      %p245 = por %p243, %p244
      %p246 = scmp.ne.s32.totalorder %s237, %s238
      %p247 = scmp.eq.s32.totalorder %s33, 0
      %p248 = por %p246, %p247
      %p249 = scmp.ne.s32.totalorder %s237, %s238
      %p250 = scmp.eq.s32.totalorder %s34, 1
      %p251 = por %p249, %p250
      %p253 = scmp.ne.s32.totalorder %s238, %s252
      %p254 = scmp.eq.s32.totalorder %s34, 0
      %p255 = por %p253, %p254
      %s257 = sadd.s32 %s256, 1
      %p260 = scmp.eq.s32.totalorder %s28, 1
      %p261 = scmp.ne.s32.totalorder %s256, %s258
      %p262 = scmp.eq.s32.totalorder %s28, 0
      %p263 = por %p261, %p262
      %p264 = scmp.ne.s32.totalorder %s256, %s258
      %p265 = scmp.eq.s32.totalorder %s33, 1
      %p266 = por %p264, %p265
      %p267 = scmp.ne.s32.totalorder %s258, %s259
      %p268 = scmp.eq.s32.totalorder %s33, 0
      %p269 = por %p267, %p268
      %p270 = scmp.ne.s32.totalorder %s258, %s259
      %p271 = scmp.eq.s32.totalorder %s34, 1
      %p272 = por %p270, %p271
      %p274 = scmp.ne.s32.totalorder %s259, %s273
      %p275 = scmp.eq.s32.totalorder %s34, 0
      %p276 = por %p274, %p275
      %s277 = ssub.s32 %s28, %s35
      %p278 = scmp.eq.s32.totalorder %s277, 0
      %s280 = sadd.s32 %s279, 1
      %s281 = scalar_select %p278, %s279, %s280
      %p284 = pneg %p278
      %p285 = scmp.eq.s32.totalorder %s28, 1
      %p286 = por %p284, %p285
      %p287 = scmp.ne.s32.totalorder %s279, %s282
      %p288 = scmp.eq.s32.totalorder %s28, 0
      %p289 = por %p287, %p288
      %p290 = scmp.ne.s32.totalorder %s279, %s282
      %p291 = scmp.eq.s32.totalorder %s33, 1
      %p292 = por %p290, %p291
      %p293 = scmp.ne.s32.totalorder %s282, %s283
      %p294 = scmp.eq.s32.totalorder %s33, 0
      %p295 = por %p293, %p294
      %p296 = scmp.ne.s32.totalorder %s282, %s283
      %p297 = scmp.eq.s32.totalorder %s34, 1
      %p298 = por %p296, %p297
      %p300 = scmp.ne.s32.totalorder %s283, %s299
      %p301 = scmp.eq.s32.totalorder %s34, 0
      %p302 = por %p300, %p301
      %p303 = scmp.le.s32.totalorder 1, %s28
      %p304 = scmp.lt.s32.totalorder %s28, 3
      %p305 = pnand %p303, %p304
      %p306 = pneg %p305
      // Predicated region
      $region9: #{tpu_custom_call.1} parent=5 // pred_check
        _
      $region10: #{tpu_custom_call.1} parent=5 // pred_check_branch
        %308 = sbr.rel (%p305) target = $region12
      $region11: #{tpu_custom_call.1} parent=5 // pred_region
        %s309 = ssub.s32 %s28, 1
        // Predicated region
        $region13: #{tpu_custom_call.1} parent=11 // pred_check
          %p310 = pneg %p101
        $region14: #{tpu_custom_call.1} parent=11 // pred_check_branch
          %312 = sbr.rel (%p310) target = $region16
        $region15: #{tpu_custom_call.1} parent=11 // pred_region
          %s314 = ssub.s32 3072, 3072
          %315 = vsyncadd [#allocation6], %s314
          %s316 = sshll.u32 [#allocation7], 4
          %s317 = int_to_ptr.vmem [resolvable:$true] %s316
          %322 = dma.hbm_to_vmem [thread:$0]  %s2, 3072, %s317, [#allocation6], 256, 256, 16
        $region16: #{tpu_custom_call.1} parent=11 // pred_fallthru
          _
        // Predicated region
        $region17: #{tpu_custom_call.1} parent=11 // pred_check
          %p323 = pneg %p122
        $region18: #{tpu_custom_call.1} parent=11 // pred_check_branch
          %325 = sbr.rel (%p323) target = $region20
        $region19: #{tpu_custom_call.1} parent=11 // pred_region
          _
        $region20: #{tpu_custom_call.1} parent=11 // pred_fallthru
          _
        // Predicated region
        $region21: #{tpu_custom_call.1} parent=11 // pred_check
          %p326 = pneg %p143
        $region22: #{tpu_custom_call.1} parent=11 // pred_check_branch
          %328 = sbr.rel (%p326) target = $region24
        $region23: #{tpu_custom_call.1} parent=11 // pred_region
          %s330 = ssub.s32 32, 32
          %331 = vsyncadd [#allocation9], %s330
          %s333 = sshll.u32 [#allocation8], 4
          %s334 = int_to_ptr.vmem [resolvable:$true] %s333
          %336 = dma.hbm_to_vmem [thread:$0]  %s4, 32, %s334, [#allocation9]
        $region24: #{tpu_custom_call.1} parent=11 // pred_fallthru
          _
        // Predicated region
        $region25: #{tpu_custom_call.1} parent=11 // pred_check
          %p337 = pneg %p164
        $region26: #{tpu_custom_call.1} parent=11 // pred_check_branch
          %339 = sbr.rel (%p337) target = $region28
        $region27: #{tpu_custom_call.1} parent=11 // pred_region
          _
        $region28: #{tpu_custom_call.1} parent=11 // pred_fallthru
          _
        // Predicated region
        $region29: #{tpu_custom_call.1} parent=11 // pred_check
          %p340 = pneg %p185
        $region30: #{tpu_custom_call.1} parent=11 // pred_check_branch
          %342 = sbr.rel (%p340) target = $region32
        $region31: #{tpu_custom_call.1} parent=11 // pred_region
          %s344 = ssub.s32 16, 16
          %345 = vsyncadd [#allocation9], %s344
          %s347 = sshll.u32 [#allocation10], 4
          %s348 = int_to_ptr.vmem [resolvable:$true] %s347
          %350 = dma.hbm_to_vmem [thread:$0]  %s6, 16, %s348, [#allocation9]
        $region32: #{tpu_custom_call.1} parent=11 // pred_fallthru
          _
        // Predicated region
        $region33: #{tpu_custom_call.1} parent=11 // pred_check
          %p351 = pneg %p206
        $region34: #{tpu_custom_call.1} parent=11 // pred_check_branch
          %353 = sbr.rel (%p351) target = $region36
        $region35: #{tpu_custom_call.1} parent=11 // pred_region
          _
        $region36: #{tpu_custom_call.1} parent=11 // pred_fallthru
          _
        // Predicated region
        $region37: #{tpu_custom_call.1} parent=11 // pred_check
          %p354 = pneg %p227
        $region38: #{tpu_custom_call.1} parent=11 // pred_check_branch
          %356 = sbr.rel (%p354) target = $region40
        $region39: #{tpu_custom_call.1} parent=11 // pred_region
          %s358 = ssub.s32 16, 16
          %359 = vsyncadd [#allocation12], %s358
          %s361 = sshll.u32 [#allocation11], 4
          %s362 = int_to_ptr.vmem [resolvable:$true] %s361
          %364 = dma.hbm_to_vmem [thread:$0]  %s8, 16, %s362, [#allocation12]
        $region40: #{tpu_custom_call.1} parent=11 // pred_fallthru
          _
        // Predicated region
        $region41: #{tpu_custom_call.1} parent=11 // pred_check
          %p365 = pneg %p248
        $region42: #{tpu_custom_call.1} parent=11 // pred_check_branch
          %367 = sbr.rel (%p365) target = $region44
        $region43: #{tpu_custom_call.1} parent=11 // pred_region
          _
        $region44: #{tpu_custom_call.1} parent=11 // pred_fallthru
          _
        // Predicated region
        $region45: #{tpu_custom_call.1} parent=11 // pred_check
          %p368 = pneg %p269
        $region46: #{tpu_custom_call.1} parent=11 // pred_check_branch
          %370 = sbr.rel (%p368) target = $region48
        $region47: #{tpu_custom_call.1} parent=11 // pred_region
          _
        $region48: #{tpu_custom_call.1} parent=11 // pred_fallthru
          _
      $region12: #{tpu_custom_call.1} parent=5 // pred_fallthru
        _
      %p371 = scmp.lt.s32.totalorder %s28, 2
      // Predicated region
      $region49: #{tpu_custom_call.1} parent=5 // pred_check
        %p372 = pneg %p371
      $region50: #{tpu_custom_call.1} parent=5 // pred_check_branch
        %374 = sbr.rel (%p372) target = $region52
      $region51: #{tpu_custom_call.1} parent=5 // pred_region
        // Predicated region
        $region53: #{tpu_custom_call.1} parent=51 // pred_check
          %p375 = pneg %p48
        $region54: #{tpu_custom_call.1} parent=51 // pred_check_branch
          %377 = sbr.rel (%p375) target = $region56
        $region55: #{tpu_custom_call.1} parent=51 // pred_region
          %s378 = sand.u32 %s38, 1
          %s379 = scalar_lea.sflag [#allocation3], %s378
          %s380 = sand.u32 %s38, 1
          %s381 = smul.addr %s380, 8
          %s382 = scalar_lea.vmem [#allocation2], %s381
          %s384 = ssub.s32 128, 128
          %385 = vsyncadd %s379, %s384
          %s386 = smul.addr %s28, 128
          %s387 = scalar_lea.hbm %s0, %s386
          %s389 = sshll.u32 %s382, 4
          %s390 = int_to_ptr.vmem [resolvable:$true] %s389
          %392 = dma.hbm_to_vmem [thread:$0]  %s387, 128, %s390, %s379
        $region56: #{tpu_custom_call.1} parent=51 // pred_fallthru
          _
        // Predicated region
        $region57: #{tpu_custom_call.1} parent=51 // pred_check
          %p393 = pneg %p74
        $region58: #{tpu_custom_call.1} parent=51 // pred_check_branch
          %395 = sbr.rel (%p393) target = $region60
        $region59: #{tpu_custom_call.1} parent=51 // pred_region
          %s396 = sand.u32 %s28, 1
          %s397 = scalar_lea.sflag [#allocation6], %s396
          %s398 = sand.u32 %s64, 1
          %s399 = smul.addr %s398, 8
          %s400 = scalar_lea.vmem [#allocation5], %s399
          %s402 = ssub.s32 128, 128
          %403 = vsyncadd %s397, %s402
          %s404 = smul.addr %s28, 128
          %s405 = scalar_lea.hbm %s1, %s404
          %s407 = sshll.u32 %s400, 4
          %s408 = int_to_ptr.vmem [resolvable:$true] %s407
          %410 = dma.hbm_to_vmem [thread:$0]  %s405, 128, %s408, %s397
        $region60: #{tpu_custom_call.1} parent=51 // pred_fallthru
          _
      $region52: #{tpu_custom_call.1} parent=5 // pred_fallthru
        _
      %p411 = scmp.le.s32.totalorder 1, %s28
      %p412 = scmp.lt.s32.totalorder %s28, 3
      %p413 = pnand %p411, %p412
      %p414 = pneg %p413
      // Predicated region
      $region61: #{tpu_custom_call.1} parent=5 // pred_check
        _
      $region62: #{tpu_custom_call.1} parent=5 // pred_check_branch
        %416 = sbr.rel (%p413) target = $region64
      $region63: #{tpu_custom_call.1} parent=5 // pred_region
        %s417 = ssub.s32 %s28, 1
        %s418 = sand.u32 %s41, 1
        %s419 = scalar_lea.sflag [#allocation3], %s418
        %s420 = sand.u32 %s41, 1
        %s421 = smul.addr %s420, 8
        %s422 = scalar_lea.vmem [#allocation2], %s421
        // Predicated region
        $region65: #{tpu_custom_call.1} parent=63 // pred_check
          %p423 = pneg %p54
        $region66: #{tpu_custom_call.1} parent=63 // pred_check_branch
          %425 = sbr.rel (%p423) target = $region68
        $region67: #{tpu_custom_call.1} parent=63 // pred_region
          %426 = dma.done %s419, 128
        $region68: #{tpu_custom_call.1} parent=63 // pred_fallthru
          _
        %s427 = sand.u32 %s33, 1
        %s428 = scalar_lea.sflag [#allocation6], %s427
        %s429 = sand.u32 %s67, 1
        %s430 = smul.addr %s429, 8
        %s431 = scalar_lea.vmem [#allocation5], %s430
        // Predicated region
        $region69: #{tpu_custom_call.1} parent=63 // pred_check
          %p432 = pneg %p80
        $region70: #{tpu_custom_call.1} parent=63 // pred_check_branch
          %434 = sbr.rel (%p432) target = $region72
        $region71: #{tpu_custom_call.1} parent=63 // pred_region
          %435 = dma.done %s428, 128
        $region72: #{tpu_custom_call.1} parent=63 // pred_fallthru
          _
        // Predicated region
        $region73: #{tpu_custom_call.1} parent=63 // pred_check
          %p436 = pneg %p101
        $region74: #{tpu_custom_call.1} parent=63 // pred_check_branch
          %438 = sbr.rel (%p436) target = $region76
        $region75: #{tpu_custom_call.1} parent=63 // pred_region
          %439 = dma.done [#allocation6], 3072
        $region76: #{tpu_custom_call.1} parent=63 // pred_fallthru
          _
        // Predicated region
        $region77: #{tpu_custom_call.1} parent=63 // pred_check
          %p440 = pneg %p143
        $region78: #{tpu_custom_call.1} parent=63 // pred_check_branch
          %442 = sbr.rel (%p440) target = $region80
        $region79: #{tpu_custom_call.1} parent=63 // pred_region
          %443 = dma.done [#allocation9], 32
        $region80: #{tpu_custom_call.1} parent=63 // pred_fallthru
          _
        // Predicated region
        $region81: #{tpu_custom_call.1} parent=63 // pred_check
          %p444 = pneg %p185
        $region82: #{tpu_custom_call.1} parent=63 // pred_check_branch
          %446 = sbr.rel (%p444) target = $region84
        $region83: #{tpu_custom_call.1} parent=63 // pred_region
          %447 = dma.done [#allocation9], 16
        $region84: #{tpu_custom_call.1} parent=63 // pred_fallthru
          _
        // Predicated region
        $region85: #{tpu_custom_call.1} parent=63 // pred_check
          %p448 = pneg %p227
        $region86: #{tpu_custom_call.1} parent=63 // pred_check_branch
          %450 = sbr.rel (%p448) target = $region88
        $region87: #{tpu_custom_call.1} parent=63 // pred_region
          %451 = dma.done [#allocation12], 16
        $region88: #{tpu_custom_call.1} parent=63 // pred_fallthru
          _
        %s452 = sand.u32 %s41, 1
        %s453 = scalar_lea.sflag [#allocation3], %s452
        %s454 = sand.u32 %s41, 1
        %s455 = smul.addr %s454, 8
        %s456 = scalar_lea.vmem [#allocation2], %s455
        %p457 = pneg %p54
        %p458 = pneg %p51
        %s459 = sand.u32 %s33, 1
        %s460 = scalar_lea.sflag [#allocation6], %s459
        %s461 = sand.u32 %s67, 1
        %s462 = smul.addr %s461, 8
        %s463 = scalar_lea.vmem [#allocation5], %s462
        %p464 = pneg %p80
        %p465 = pneg %p77
        %p466 = pneg %p101
        %p467 = pneg %p98
        %p468 = pneg %p122
        %p469 = pneg %p119
        %p470 = pneg %p143
        %p471 = pneg %p140
        %p472 = pneg %p164
        %p473 = pneg %p161
        %p474 = pneg %p185
        %p475 = pneg %p182
        %p476 = pneg %p206
        %p477 = pneg %p203
        %p478 = pneg %p227
        %p479 = pneg %p224
        %p480 = pneg %p248
        %p481 = pneg %p245
        %p482 = pneg %p269
        %p483 = pneg %p266
        %p484 = pneg %p295
        %p485 = pneg %p292
        %s486 = sand.u32 %s282, 1
        %s487 = scalar_lea.sflag [#allocation4], %s486
        %s488 = sand.u32 %s282, 1
        %s489 = smul.addr %s488, 8
        %s490 = scalar_lea.vmem [#allocation13], %s489
        %v491 = vld [vmem:[%s422] sm:$0xff]
        %vm492 = vcmask 785408
        %v493 = vsel %vm492, %v491, 0.0
        %494 = vadd.xlane.f32.xlu0 %v493
        %v495 = vpop.xlane.xlu0 %494
        %v496 = vrcp.pop 96.0
        %v497 = vmul.f32 %v495, %v496
        %v498 = vsub.f32 %v491, %v497
        %v499 = vmul.f32 %v498, %v498
        %v500 = vsel %vm492, %v499, 0.0
        %501 = vadd.xlane.f32.xlu0 %v500
        %v502 = vpop.xlane.xlu0 %501
        %v503 = vmul.f32 %v502, %v496
        %v504 = vadd.f32 %v503, 1e-05
        %v505 = vrsqrt.pop %v504
        %v506 = vmul.f32 %v504, %v505
        %v507 = vld [vmem:[#allocation7] sm:$0xff]
        %v508 = vld [vmem:[#allocation7 + $0x8] sm:$0xff]
        %v509 = vld [vmem:[#allocation7 + $0x10] sm:$0xff]
        %v510 = vld [vmem:[#allocation7 + $0x18] sm:$0xff]
        %v511 = vld [vmem:[#allocation7 + $0x20] sm:$0xff]
        %v512 = vld [vmem:[#allocation7 + $0x28] sm:$0xff]
        %v513 = vld [vmem:[#allocation7 + $0x30] sm:$0xff]
        %v514 = vld [vmem:[#allocation7 + $0x38] sm:$0xff]
        %v515 = vld [vmem:[#allocation7 + $0x40] sm:$0xff]
        %v516 = vld [vmem:[#allocation7 + $0x48] sm:$0xff]
        %v517 = vld [vmem:[#allocation7 + $0x50] sm:$0xff]
        %v518 = vld [vmem:[#allocation7 + $0x58] sm:$0xff]
        %v519 = vld [vmem:[#allocation7 + $0x60] sm:$0xff]
        %v520 = vld [vmem:[#allocation7 + $0x68] sm:$0xff]
        %v521 = vld [vmem:[#allocation7 + $0x70] sm:$0xff]
        %v522 = vld [vmem:[#allocation7 + $0x78] sm:$0xff]
        %v523 = vld [vmem:[#allocation7 + $0x80] sm:$0xff]
        %v524 = vld [vmem:[#allocation7 + $0x88] sm:$0xff]
        %v525 = vld [vmem:[#allocation7 + $0x90] sm:$0xff]
        %v526 = vld [vmem:[#allocation7 + $0x98] sm:$0xff]
        %v527 = vld [vmem:[#allocation7 + $0xa0] sm:$0xff]
        %v528 = vld [vmem:[#allocation7 + $0xa8] sm:$0xff]
        %v529 = vld [vmem:[#allocation7 + $0xb0] sm:$0xff]
        %v530 = vld [vmem:[#allocation7 + $0xb8] sm:$0xff]
        %v532 = vsel %vm492, %v491, 0
        %534 = vmatprep.subr.mxu0 %v508
        %535 = vmatpush1.msra.mxu0 %v507
        %536 = vmatprep.subr.mxu0 %v510
        %537 = vmatpush1.msra.mxu0 %v509
        %538 = vmatprep.subr.mxu0 %v512
        %539 = vmatpush1.msra.mxu0 %v511
        %540 = vmatprep.subr.mxu0 %v514
        %541 = vmatpush1.msra.mxu0 %v513
        %542 = vmatprep.subr.mxu0 %v516
        %543 = vmatpush1.msra.mxu0 %v515
        %544 = vmatprep.subr.mxu0 %v518
        %545 = vmatpush1.msra.mxu0 %v517
        %546 = vmatprep.subr.mxu0 %v520
        %547 = vmatpush1.msra.mxu0 %v519
        %548 = vmatprep.subr.mxu0 %v522
        %549 = vmatpush1.msra.mxu0 %v521
        %550 = vmatprep.subr.mxu0 %v524
        %551 = vmatpush1.msra.mxu0 %v523
        %552 = vmatprep.subr.mxu0 %v526
        %553 = vmatpush1.msra.mxu0 %v525
        %554 = vmatprep.subr.mxu0 %v528
        %555 = vmatpush1.msra.mxu0 %v527
        %556 = vmatprep.subr.mxu0 %v530
        %557 = vmatpush1.msra.mxu0 %v529
        %558 = vmatprep.subr.mxu0 0.0
        %559 = vmatpush1.msra.mxu0 0.0
        %560 = vmatprep.subr.mxu0 0.0
        %561 = vmatpush1.msra.mxu0 0.0
        %562 = vmatprep.subr.mxu0 0.0
        %563 = vmatpush1.msra.mxu0 0.0
        %564 = vmatprep.subr.mxu0 0.0
        %565 = vmatpush1.msra.mxu0 0.0
        %566 = vmatprep.subr.mxu0 0.0
        %567 = vmatpush1.msra.mxu0 0.0
        %568 = vmatprep.subr.mxu0 0.0
        %569 = vmatpush1.msra.mxu0 0.0
        %570 = vmatprep.subr.mxu0 0.0
        %571 = vmatpush1.msra.mxu0 0.0
        %572 = vmatprep.subr.mxu0 0.0
        %573 = vmatpush1.msra.mxu0 0.0
        %574 = vmatprep.subr.mxu0 0.0
        %575 = vmatpush1.msra.mxu0 0.0
        %576 = vmatprep.subr.mxu0 0.0
        %577 = vmatpush1.msra.mxu0 0.0
        %578 = vmatprep.subr.mxu0 0.0
        %579 = vmatpush1.msra.mxu0 0.0
        %580 = vmatprep.subr.mxu0 0.0
        %581 = vmatpush1.msra.mxu0 0.0
        %582 = vmatprep.subr.mxu0 0.0
        %583 = vmatpush1.msra.mxu0 0.0
        %584 = vmatprep.subr.mxu0 0.0
        %585 = vmatpush1.msra.mxu0 0.0
        %586 = vmatprep.subr.mxu0 0.0
        %587 = vmatpush1.msra.mxu0 0.0
        %588 = vmatprep.subr.mxu0 0.0
        %589 = vmatpush1.msra.mxu0 0.0
        %590 = vmatprep.subr.mxu0 0.0
        %591 = vmatpush1.msra.mxu0 0.0
        %592 = vmatprep.subr.mxu0 0.0
        %593 = vmatpush1.msra.mxu0 0.0
        %594 = vmatprep.subr.mxu0 0.0
        %595 = vmatpush1.msra.mxu0 0.0
        %596 = vmatprep.subr.mxu0 0.0
        %597 = vmatpush1.msra.mxu0 0.0
        %598 = vmatprep.mubr.f32.mxu0 0.0
        %599 = vmatmul.mubr.f32.gmra.mrb[0].mxu0 %v532
        %v600 = vpop.f32.mrb[0].mxu0
        %v601 = vadd.f32 0.0, %v600
        %v602 = vpop.f32.mrb[0].mxu0
        %v603 = vadd.f32 0.0, %v602
        %604 = vdwg.mxu0
        %v605 = vmul.f32 %v505, %v601
        %v606 = vmul.f32 %v505, %v603
        %v607 = vmul.f32 %v505, %v497
        %v608 = vld [vmem:[%s3] sm:$0x3]
        %v610 = vlaneseq
        %v611 = vshrl.u32 %v610, 7
        %v612 = vsub.s32 0, %v611
        %v613 = vrot.slane %v608, %v612
        %v614 = vlaneseq
        %v615 = vshrl.u32 %v614, 7
        %v616 = vsub.s32 1, %v615
        %v617 = vrot.slane %v608, %v616
        %v620 = vmul.f32 %v607, %v613
        %v621 = vmul.f32 %v607, %v617
        %v622 = vsub.f32 %v605, %v620
        %v623 = vsub.f32 %v606, %v621
        %v624 = vld [vmem:[#allocation8] sm:$0x3]
        %v626 = vlaneseq
        %v627 = vshrl.u32 %v626, 7
        %v628 = vsub.s32 0, %v627
        %v629 = vrot.slane %v624, %v628
        %v630 = vlaneseq
        %v631 = vshrl.u32 %v630, 7
        %v632 = vsub.s32 1, %v631
        %v633 = vrot.slane %v624, %v632
        %v636 = vadd.f32 %v622, %v629
        %v637 = vadd.f32 %v623, %v633
        %v638 = vmax.f32 %v636, 0.0
        %v639 = vmax.f32 %v637, 0.0
        %v640 = vld [vmem:[%s5] sm:$0xff]
        %v641 = vld [vmem:[%s5 + $0x8] sm:$0xff]
        %v642 = vld [vmem:[%s5 + $0x10] sm:$0xff]
        %v643 = vld [vmem:[%s5 + $0x18] sm:$0xff]
        %v644 = vld [vmem:[#allocation10] sm:$0x1]
        %v645 = vld [vmem:[%s7] sm:$0xff]
        %v646 = vld [vmem:[%s7 + $0x8] sm:$0xff]
        %v647 = vld [vmem:[%s7 + $0x10] sm:$0xff]
        %v648 = vld [vmem:[%s7 + $0x18] sm:$0xff]
        %v649 = vld [vmem:[#allocation11] sm:$0x1]
        %v651 = vlaneseq
        %v652 = vshrl.u32 %v651, 7
        %v653 = vsub.s32 0, %v652
        %v654 = vrot.slane %v644, %v653
        %vm656 = vcmask 261120
        %v658 = vsel %vm656, %v638, 0
        %660 = vmatprep.subr.mxu0 0.0
        %661 = vmatpush1.msra.mxu0 %v640
        %662 = vmatprep.subr.mxu0 0.0
        %663 = vmatpush1.msra.mxu0 %v641
        %664 = vmatprep.subr.mxu0 0.0
        %665 = vmatpush1.msra.mxu0 %v642
        %666 = vmatprep.subr.mxu0 0.0
        %667 = vmatpush1.msra.mxu0 %v643
        %668 = vmatprep.subr.mxu0 0.0
        %669 = vmatpush1.msra.mxu0 0.0
        %670 = vmatprep.subr.mxu0 0.0
        %671 = vmatpush1.msra.mxu0 0.0
        %672 = vmatprep.subr.mxu0 0.0
        %673 = vmatpush1.msra.mxu0 0.0
        %674 = vmatprep.subr.mxu0 0.0
        %675 = vmatpush1.msra.mxu0 0.0
        %676 = vmatprep.subr.mxu0 0.0
        %677 = vmatpush1.msra.mxu0 0.0
        %678 = vmatprep.subr.mxu0 0.0
        %679 = vmatpush1.msra.mxu0 0.0
        %680 = vmatprep.subr.mxu0 0.0
        %681 = vmatpush1.msra.mxu0 0.0
        %682 = vmatprep.subr.mxu0 0.0
        %683 = vmatpush1.msra.mxu0 0.0
        %684 = vmatprep.subr.mxu0 0.0
        %685 = vmatpush1.msra.mxu0 0.0
        %686 = vmatprep.subr.mxu0 0.0
        %687 = vmatpush1.msra.mxu0 0.0
        %688 = vmatprep.subr.mxu0 0.0
        %689 = vmatpush1.msra.mxu0 0.0
        %690 = vmatprep.subr.mxu0 0.0
        %691 = vmatpush1.msra.mxu0 0.0
        %692 = vmatprep.subr.mxu0 0.0
        %693 = vmatpush1.msra.mxu0 0.0
        %694 = vmatprep.subr.mxu0 0.0
        %695 = vmatpush1.msra.mxu0 0.0
        %696 = vmatprep.subr.mxu0 0.0
        %697 = vmatpush1.msra.mxu0 0.0
        %698 = vmatprep.subr.mxu0 0.0
        %699 = vmatpush1.msra.mxu0 0.0
        %700 = vmatprep.subr.mxu0 0.0
        %701 = vmatpush1.msra.mxu0 0.0
        %702 = vmatprep.subr.mxu0 0.0
        %703 = vmatpush1.msra.mxu0 0.0
        %704 = vmatprep.subr.mxu0 0.0
        %705 = vmatpush1.msra.mxu0 0.0
        %706 = vmatprep.subr.mxu0 0.0
        %707 = vmatpush1.msra.mxu0 0.0
        %708 = vmatprep.subr.mxu0 0.0
        %709 = vmatpush1.msra.mxu0 0.0
        %710 = vmatprep.subr.mxu0 0.0
        %711 = vmatpush1.msra.mxu0 0.0
        %712 = vmatprep.subr.mxu0 0.0
        %713 = vmatpush1.msra.mxu0 0.0
        %714 = vmatprep.subr.mxu0 0.0
        %715 = vmatpush1.msra.mxu0 0.0
        %716 = vmatprep.subr.mxu0 0.0
        %717 = vmatpush1.msra.mxu0 0.0
        %718 = vmatprep.subr.mxu0 0.0
        %719 = vmatpush1.msra.mxu0 0.0
        %720 = vmatprep.subr.mxu0 0.0
        %721 = vmatpush1.msra.mxu0 0.0
        %722 = vmatprep.subr.mxu0 0.0
        %723 = vmatpush1.msra.mxu0 0.0
        %724 = vmatprep.mubr.f32.mxu0 0.0
        %725 = vmatmul.mubr.f32.gmra.mrb[0].mxu0 %v658
        %v726 = vpop.f32.mrb[0].mxu0
        %v727 = vadd.f32 %v654, %v726
        %v728 = vpop.f32.mrb[0].mxu0
        %729 = vdwg.mxu0
        %v731 = vlaneseq
        %v732 = vshrl.u32 %v731, 7
        %v733 = vsub.s32 0, %v732
        %v734 = vrot.slane %v649, %v733
        %v737 = vsel %vm656, 0.0, 0
        %739 = vmatprep.subr.mxu0 0.0
        %740 = vmatpush1.msra.mxu0 %v645
        %741 = vmatprep.subr.mxu0 0.0
        %742 = vmatpush1.msra.mxu0 %v646
        %743 = vmatprep.subr.mxu0 0.0
        %744 = vmatpush1.msra.mxu0 %v647
        %745 = vmatprep.subr.mxu0 0.0
        %746 = vmatpush1.msra.mxu0 %v648
        %747 = vmatprep.subr.mxu0 0.0
        %748 = vmatpush1.msra.mxu0 0.0
        %749 = vmatprep.subr.mxu0 0.0
        %750 = vmatpush1.msra.mxu0 0.0
        %751 = vmatprep.subr.mxu0 0.0
        %752 = vmatpush1.msra.mxu0 0.0
        %753 = vmatprep.subr.mxu0 0.0
        %754 = vmatpush1.msra.mxu0 0.0
        %755 = vmatprep.subr.mxu0 0.0
        %756 = vmatpush1.msra.mxu0 0.0
        %757 = vmatprep.subr.mxu0 0.0
        %758 = vmatpush1.msra.mxu0 0.0
        %759 = vmatprep.subr.mxu0 0.0
        %760 = vmatpush1.msra.mxu0 0.0
        %761 = vmatprep.subr.mxu0 0.0
        %762 = vmatpush1.msra.mxu0 0.0
        %763 = vmatprep.subr.mxu0 0.0
        %764 = vmatpush1.msra.mxu0 0.0
        %765 = vmatprep.subr.mxu0 0.0
        %766 = vmatpush1.msra.mxu0 0.0
        %767 = vmatprep.subr.mxu0 0.0
        %768 = vmatpush1.msra.mxu0 0.0
        %769 = vmatprep.subr.mxu0 0.0
        %770 = vmatpush1.msra.mxu0 0.0
        %771 = vmatprep.subr.mxu0 0.0
        %772 = vmatpush1.msra.mxu0 0.0
        %773 = vmatprep.subr.mxu0 0.0
        %774 = vmatpush1.msra.mxu0 0.0
        %775 = vmatprep.subr.mxu0 0.0
        %776 = vmatpush1.msra.mxu0 0.0
        %777 = vmatprep.subr.mxu0 0.0
        %778 = vmatpush1.msra.mxu0 0.0
        %779 = vmatprep.subr.mxu0 0.0
        %780 = vmatpush1.msra.mxu0 0.0
        %781 = vmatprep.subr.mxu0 0.0
        %782 = vmatpush1.msra.mxu0 0.0
        %783 = vmatprep.subr.mxu0 0.0
        %784 = vmatpush1.msra.mxu0 0.0
        %785 = vmatprep.subr.mxu0 0.0
        %786 = vmatpush1.msra.mxu0 0.0
        %787 = vmatprep.subr.mxu0 0.0
        %788 = vmatpush1.msra.mxu0 0.0
        %789 = vmatprep.subr.mxu0 0.0
        %790 = vmatpush1.msra.mxu0 0.0
        %791 = vmatprep.subr.mxu0 0.0
        %792 = vmatpush1.msra.mxu0 0.0
        %793 = vmatprep.subr.mxu0 0.0
        %794 = vmatpush1.msra.mxu0 0.0
        %795 = vmatprep.subr.mxu0 0.0
        %796 = vmatpush1.msra.mxu0 0.0
        %797 = vmatprep.subr.mxu0 0.0
        %798 = vmatpush1.msra.mxu0 0.0
        %799 = vmatprep.subr.mxu0 0.0
        %800 = vmatpush1.msra.mxu0 0.0
        %801 = vmatprep.subr.mxu0 0.0
        %802 = vmatpush1.msra.mxu0 0.0
        %803 = vmatprep.mubr.f32.mxu0 0.0
        %804 = vmatmul.mubr.f32.gmra.mrb[0].mxu0 %v737
        %v805 = vpop.f32.mrb[0].mxu0
        %v806 = vadd.f32 %v734, %v805
        %v807 = vpop.f32.mrb[0].mxu0
        %808 = vdwg.mxu0
        %v809 = vadd.f32 %v727, %v806
        %v810 = vxor.u32 %v809, 2147483648
        %v811 = vmul.f32 %v810, 1.442695
        %v812 = vpow.pop %v811
        %v813 = vadd.f32 %v812, 1.0
        %v814 = vrcp.pop %v813
        %v815 = vmul.f32 1.0, %v814
        %817 = vrot.lane.b32.xlu0 %v806, 64
        %v818 = vpop.permute.xlu0 %817
        %v820 = vmul.f32 %v815, %v818
        %822 = vrot.lane.b32.xlu0 %v820, 64
        %v823 = vpop.permute.xlu0 %822
        %v825 = vadd.f32 %v727, %v823
        %v826 = vtanh.pop %v825
        %v827 = vsub.f32 1.0, %v815
        %829 = vrot.lane.b32.xlu0 %v826, 96
        %v830 = vpop.permute.xlu0 %829
        %v832 = vmul.f32 %v827, %v830
        %v833 = vmul.f32 %v815, 0.0
        %v834 = vadd.f32 %v832, %v833
        %835 = vrot.lane.b32.xlu0 %v638, 96
        %v836 = vpop.permute.xlu0 %835
        %v837 = vsel %vm656, %v836, 0
        %839 = vmatprep.subr.mxu0 0.0
        %840 = vmatpush1.msra.mxu0 %v640
        %841 = vmatprep.subr.mxu0 0.0
        %842 = vmatpush1.msra.mxu0 %v641
        %843 = vmatprep.subr.mxu0 0.0
        %844 = vmatpush1.msra.mxu0 %v642
        %845 = vmatprep.subr.mxu0 0.0
        %846 = vmatpush1.msra.mxu0 %v643
        %847 = vmatprep.subr.mxu0 0.0
        %848 = vmatpush1.msra.mxu0 0.0
        %849 = vmatprep.subr.mxu0 0.0
        %850 = vmatpush1.msra.mxu0 0.0
        %851 = vmatprep.subr.mxu0 0.0
        %852 = vmatpush1.msra.mxu0 0.0
        %853 = vmatprep.subr.mxu0 0.0
        %854 = vmatpush1.msra.mxu0 0.0
        %855 = vmatprep.subr.mxu0 0.0
        %856 = vmatpush1.msra.mxu0 0.0
        %857 = vmatprep.subr.mxu0 0.0
        %858 = vmatpush1.msra.mxu0 0.0
        %859 = vmatprep.subr.mxu0 0.0
        %860 = vmatpush1.msra.mxu0 0.0
        %861 = vmatprep.subr.mxu0 0.0
        %862 = vmatpush1.msra.mxu0 0.0
        %863 = vmatprep.subr.mxu0 0.0
        %864 = vmatpush1.msra.mxu0 0.0
        %865 = vmatprep.subr.mxu0 0.0
        %866 = vmatpush1.msra.mxu0 0.0
        %867 = vmatprep.subr.mxu0 0.0
        %868 = vmatpush1.msra.mxu0 0.0
        %869 = vmatprep.subr.mxu0 0.0
        %870 = vmatpush1.msra.mxu0 0.0
        %871 = vmatprep.subr.mxu0 0.0
        %872 = vmatpush1.msra.mxu0 0.0
        %873 = vmatprep.subr.mxu0 0.0
        %874 = vmatpush1.msra.mxu0 0.0
        %875 = vmatprep.subr.mxu0 0.0
        %876 = vmatpush1.msra.mxu0 0.0
        %877 = vmatprep.subr.mxu0 0.0
        %878 = vmatpush1.msra.mxu0 0.0
        %879 = vmatprep.subr.mxu0 0.0
        %880 = vmatpush1.msra.mxu0 0.0
        %881 = vmatprep.subr.mxu0 0.0
        %882 = vmatpush1.msra.mxu0 0.0
        %883 = vmatprep.subr.mxu0 0.0
        %884 = vmatpush1.msra.mxu0 0.0
        %885 = vmatprep.subr.mxu0 0.0
        %886 = vmatpush1.msra.mxu0 0.0
        %887 = vmatprep.subr.mxu0 0.0
        %888 = vmatpush1.msra.mxu0 0.0
        %889 = vmatprep.subr.mxu0 0.0
        %890 = vmatpush1.msra.mxu0 0.0
        %891 = vmatprep.subr.mxu0 0.0
        %892 = vmatpush1.msra.mxu0 0.0
        %893 = vmatprep.subr.mxu0 0.0
        %894 = vmatpush1.msra.mxu0 0.0
        %895 = vmatprep.subr.mxu0 0.0
        %896 = vmatpush1.msra.mxu0 0.0
        %897 = vmatprep.subr.mxu0 0.0
        %898 = vmatpush1.msra.mxu0 0.0
        %899 = vmatprep.subr.mxu0 0.0
        %900 = vmatpush1.msra.mxu0 0.0
        %901 = vmatprep.subr.mxu0 0.0
        %902 = vmatpush1.msra.mxu0 0.0
        %903 = vmatprep.mubr.f32.mxu0 0.0
        %904 = vmatmul.mubr.f32.gmra.mrb[0].mxu0 %v837
        %v905 = vpop.f32.mrb[0].mxu0
        %v906 = vadd.f32 %v654, %v905
        %v907 = vpop.f32.mrb[0].mxu0
        %908 = vdwg.mxu0
        %910 = vrot.lane.b32.xlu0 %v834, 96
        %v911 = vpop.permute.xlu0 %910
        %v912 = vsel %vm656, %v911, 0
        %914 = vmatprep.subr.mxu0 0.0
        %915 = vmatpush1.msra.mxu0 %v645
        %916 = vmatprep.subr.mxu0 0.0
        %917 = vmatpush1.msra.mxu0 %v646
        %918 = vmatprep.subr.mxu0 0.0
        %919 = vmatpush1.msra.mxu0 %v647
        %920 = vmatprep.subr.mxu0 0.0
        %921 = vmatpush1.msra.mxu0 %v648
        %922 = vmatprep.subr.mxu0 0.0
        %923 = vmatpush1.msra.mxu0 0.0
        %924 = vmatprep.subr.mxu0 0.0
        %925 = vmatpush1.msra.mxu0 0.0
        %926 = vmatprep.subr.mxu0 0.0
        %927 = vmatpush1.msra.mxu0 0.0
        %928 = vmatprep.subr.mxu0 0.0
        %929 = vmatpush1.msra.mxu0 0.0
        %930 = vmatprep.subr.mxu0 0.0
        %931 = vmatpush1.msra.mxu0 0.0
        %932 = vmatprep.subr.mxu0 0.0
        %933 = vmatpush1.msra.mxu0 0.0
        %934 = vmatprep.subr.mxu0 0.0
        %935 = vmatpush1.msra.mxu0 0.0
        %936 = vmatprep.subr.mxu0 0.0
        %937 = vmatpush1.msra.mxu0 0.0
        %938 = vmatprep.subr.mxu0 0.0
        %939 = vmatpush1.msra.mxu0 0.0
        %940 = vmatprep.subr.mxu0 0.0
        %941 = vmatpush1.msra.mxu0 0.0
        %942 = vmatprep.subr.mxu0 0.0
        %943 = vmatpush1.msra.mxu0 0.0
        %944 = vmatprep.subr.mxu0 0.0
        %945 = vmatpush1.msra.mxu0 0.0
        %946 = vmatprep.subr.mxu0 0.0
        %947 = vmatpush1.msra.mxu0 0.0
        %948 = vmatprep.subr.mxu0 0.0
        %949 = vmatpush1.msra.mxu0 0.0
        %950 = vmatprep.subr.mxu0 0.0
        %951 = vmatpush1.msra.mxu0 0.0
        %952 = vmatprep.subr.mxu0 0.0
        %953 = vmatpush1.msra.mxu0 0.0
        %954 = vmatprep.subr.mxu0 0.0
        %955 = vmatpush1.msra.mxu0 0.0
        %956 = vmatprep.subr.mxu0 0.0
        %957 = vmatpush1.msra.mxu0 0.0
        %958 = vmatprep.subr.mxu0 0.0
        %959 = vmatpush1.msra.mxu0 0.0
        %960 = vmatprep.subr.mxu0 0.0
        %961 = vmatpush1.msra.mxu0 0.0
        %962 = vmatprep.subr.mxu0 0.0
        %963 = vmatpush1.msra.mxu0 0.0
        %964 = vmatprep.subr.mxu0 0.0
        %965 = vmatpush1.msra.mxu0 0.0
        %966 = vmatprep.subr.mxu0 0.0
        %967 = vmatpush1.msra.mxu0 0.0
        %968 = vmatprep.subr.mxu0 0.0
        %969 = vmatpush1.msra.mxu0 0.0
        %970 = vmatprep.subr.mxu0 0.0
        %971 = vmatpush1.msra.mxu0 0.0
        %972 = vmatprep.subr.mxu0 0.0
        %973 = vmatpush1.msra.mxu0 0.0
        %974 = vmatprep.subr.mxu0 0.0
        %975 = vmatpush1.msra.mxu0 0.0
        %976 = vmatprep.subr.mxu0 0.0
        %977 = vmatpush1.msra.mxu0 0.0
        %978 = vmatprep.mubr.f32.mxu0 0.0
        %979 = vmatmul.mubr.f32.gmra.mrb[0].mxu0 %v912
        %v980 = vpop.f32.mrb[0].mxu0
        %v981 = vadd.f32 %v734, %v980
        %v982 = vpop.f32.mrb[0].mxu0
        %983 = vdwg.mxu0
        %v984 = vadd.f32 %v906, %v981
        %v985 = vxor.u32 %v984, 2147483648
        %v986 = vmul.f32 %v985, 1.442695
        %v987 = vpow.pop %v986
        %v988 = vadd.f32 %v987, 1.0
        %v989 = vrcp.pop %v988
        %v990 = vmul.f32 1.0, %v989
        %992 = vrot.lane.b32.xlu0 %v981, 64
        %v993 = vpop.permute.xlu0 %992
        %v995 = vmul.f32 %v990, %v993
        %997 = vrot.lane.b32.xlu0 %v995, 64
        %v998 = vpop.permute.xlu0 %997
        %v1000 = vadd.f32 %v906, %v998
        %v1001 = vtanh.pop %v1000
        %v1002 = vsub.f32 1.0, %v990
        %1004 = vrot.lane.b32.xlu0 %v1001, 96
        %v1005 = vpop.permute.xlu0 %1004
        %v1007 = vmul.f32 %v1002, %v1005
        %v1008 = vmul.f32 %v990, %v834
        %v1009 = vadd.f32 %v1007, %v1008
        %1010 = vrot.lane.b32.xlu0 %v638, 64
        %v1011 = vpop.permute.xlu0 %1010
        %v1012 = vsel %vm656, %v1011, 0
        %1014 = vmatprep.subr.mxu0 0.0
        %1015 = vmatpush1.msra.mxu0 %v640
        %1016 = vmatprep.subr.mxu0 0.0
        %1017 = vmatpush1.msra.mxu0 %v641
        %1018 = vmatprep.subr.mxu0 0.0
        %1019 = vmatpush1.msra.mxu0 %v642
        %1020 = vmatprep.subr.mxu0 0.0
        %1021 = vmatpush1.msra.mxu0 %v643
        %1022 = vmatprep.subr.mxu0 0.0
        %1023 = vmatpush1.msra.mxu0 0.0
        %1024 = vmatprep.subr.mxu0 0.0
        %1025 = vmatpush1.msra.mxu0 0.0
        %1026 = vmatprep.subr.mxu0 0.0
        %1027 = vmatpush1.msra.mxu0 0.0
        %1028 = vmatprep.subr.mxu0 0.0
        %1029 = vmatpush1.msra.mxu0 0.0
        %1030 = vmatprep.subr.mxu0 0.0
        %1031 = vmatpush1.msra.mxu0 0.0
        %1032 = vmatprep.subr.mxu0 0.0
        %1033 = vmatpush1.msra.mxu0 0.0
        %1034 = vmatprep.subr.mxu0 0.0
        %1035 = vmatpush1.msra.mxu0 0.0
        %1036 = vmatprep.subr.mxu0 0.0
        %1037 = vmatpush1.msra.mxu0 0.0
        %1038 = vmatprep.subr.mxu0 0.0
        %1039 = vmatpush1.msra.mxu0 0.0
        %1040 = vmatprep.subr.mxu0 0.0
        %1041 = vmatpush1.msra.mxu0 0.0
        %1042 = vmatprep.subr.mxu0 0.0
        %1043 = vmatpush1.msra.mxu0 0.0
        %1044 = vmatprep.subr.mxu0 0.0
        %1045 = vmatpush1.msra.mxu0 0.0
        %1046 = vmatprep.subr.mxu0 0.0
        %1047 = vmatpush1.msra.mxu0 0.0
        %1048 = vmatprep.subr.mxu0 0.0
        %1049 = vmatpush1.msra.mxu0 0.0
        %1050 = vmatprep.subr.mxu0 0.0
        %1051 = vmatpush1.msra.mxu0 0.0
        %1052 = vmatprep.subr.mxu0 0.0
        %1053 = vmatpush1.msra.mxu0 0.0
        %1054 = vmatprep.subr.mxu0 0.0
        %1055 = vmatpush1.msra.mxu0 0.0
        %1056 = vmatprep.subr.mxu0 0.0
        %1057 = vmatpush1.msra.mxu0 0.0
        %1058 = vmatprep.subr.mxu0 0.0
        %1059 = vmatpush1.msra.mxu0 0.0
        %1060 = vmatprep.subr.mxu0 0.0
        %1061 = vmatpush1.msra.mxu0 0.0
        %1062 = vmatprep.subr.mxu0 0.0
        %1063 = vmatpush1.msra.mxu0 0.0
        %1064 = vmatprep.subr.mxu0 0.0
        %1065 = vmatpush1.msra.mxu0 0.0
        %1066 = vmatprep.subr.mxu0 0.0
        %1067 = vmatpush1.msra.mxu0 0.0
        %1068 = vmatprep.subr.mxu0 0.0
        %1069 = vmatpush1.msra.mxu0 0.0
        %1070 = vmatprep.subr.mxu0 0.0
        %1071 = vmatpush1.msra.mxu0 0.0
        %1072 = vmatprep.subr.mxu0 0.0
        %1073 = vmatpush1.msra.mxu0 0.0
        %1074 = vmatprep.subr.mxu0 0.0
        %1075 = vmatpush1.msra.mxu0 0.0
        %1076 = vmatprep.subr.mxu0 0.0
        %1077 = vmatpush1.msra.mxu0 0.0
        %1078 = vmatprep.mubr.f32.mxu0 0.0
        %1079 = vmatmul.mubr.f32.gmra.mrb[0].mxu0 %v1012
        %v1080 = vpop.f32.mrb[0].mxu0
        %v1081 = vadd.f32 %v654, %v1080
        %v1082 = vpop.f32.mrb[0].mxu0
        %1083 = vdwg.mxu0
        %1085 = vrot.lane.b32.xlu0 %v1009, 96
        %v1086 = vpop.permute.xlu0 %1085
        %v1087 = vsel %vm656, %v1086, 0
        %1089 = vmatprep.subr.mxu0 0.0
        %1090 = vmatpush1.msra.mxu0 %v645
        %1091 = vmatprep.subr.mxu0 0.0
        %1092 = vmatpush1.msra.mxu0 %v646
        %1093 = vmatprep.subr.mxu0 0.0
        %1094 = vmatpush1.msra.mxu0 %v647
        %1095 = vmatprep.subr.mxu0 0.0
        %1096 = vmatpush1.msra.mxu0 %v648
        %1097 = vmatprep.subr.mxu0 0.0
        %1098 = vmatpush1.msra.mxu0 0.0
        %1099 = vmatprep.subr.mxu0 0.0
        %1100 = vmatpush1.msra.mxu0 0.0
        %1101 = vmatprep.subr.mxu0 0.0
        %1102 = vmatpush1.msra.mxu0 0.0
        %1103 = vmatprep.subr.mxu0 0.0
        %1104 = vmatpush1.msra.mxu0 0.0
        %1105 = vmatprep.subr.mxu0 0.0
        %1106 = vmatpush1.msra.mxu0 0.0
        %1107 = vmatprep.subr.mxu0 0.0
        %1108 = vmatpush1.msra.mxu0 0.0
        %1109 = vmatprep.subr.mxu0 0.0
        %1110 = vmatpush1.msra.mxu0 0.0
        %1111 = vmatprep.subr.mxu0 0.0
        %1112 = vmatpush1.msra.mxu0 0.0
        %1113 = vmatprep.subr.mxu0 0.0
        %1114 = vmatpush1.msra.mxu0 0.0
        %1115 = vmatprep.subr.mxu0 0.0
        %1116 = vmatpush1.msra.mxu0 0.0
        %1117 = vmatprep.subr.mxu0 0.0
        %1118 = vmatpush1.msra.mxu0 0.0
        %1119 = vmatprep.subr.mxu0 0.0
        %1120 = vmatpush1.msra.mxu0 0.0
        %1121 = vmatprep.subr.mxu0 0.0
        %1122 = vmatpush1.msra.mxu0 0.0
        %1123 = vmatprep.subr.mxu0 0.0
        %1124 = vmatpush1.msra.mxu0 0.0
        %1125 = vmatprep.subr.mxu0 0.0
        %1126 = vmatpush1.msra.mxu0 0.0
        %1127 = vmatprep.subr.mxu0 0.0
        %1128 = vmatpush1.msra.mxu0 0.0
        %1129 = vmatprep.subr.mxu0 0.0
        %1130 = vmatpush1.msra.mxu0 0.0
        %1131 = vmatprep.subr.mxu0 0.0
        %1132 = vmatpush1.msra.mxu0 0.0
        %1133 = vmatprep.subr.mxu0 0.0
        %1134 = vmatpush1.msra.mxu0 0.0
        %1135 = vmatprep.subr.mxu0 0.0
        %1136 = vmatpush1.msra.mxu0 0.0
        %1137 = vmatprep.subr.mxu0 0.0
        %1138 = vmatpush1.msra.mxu0 0.0
        %1139 = vmatprep.subr.mxu0 0.0
        %1140 = vmatpush1.msra.mxu0 0.0
        %1141 = vmatprep.subr.mxu0 0.0
        %1142 = vmatpush1.msra.mxu0 0.0
        %1143 = vmatprep.subr.mxu0 0.0
        %1144 = vmatpush1.msra.mxu0 0.0
        %1145 = vmatprep.subr.mxu0 0.0
        %1146 = vmatpush1.msra.mxu0 0.0
        %1147 = vmatprep.subr.mxu0 0.0
        %1148 = vmatpush1.msra.mxu0 0.0
        %1149 = vmatprep.subr.mxu0 0.0
        %1150 = vmatpush1.msra.mxu0 0.0
        %1151 = vmatprep.subr.mxu0 0.0
        %1152 = vmatpush1.msra.mxu0 0.0
        %1153 = vmatprep.mubr.f32.mxu0 0.0
        %1154 = vmatmul.mubr.f32.gmra.mrb[0].mxu0 %v1087
        %v1155 = vpop.f32.mrb[0].mxu0
        %v1156 = vadd.f32 %v734, %v1155
        %v1157 = vpop.f32.mrb[0].mxu0
        %1158 = vdwg.mxu0
        %v1159 = vadd.f32 %v1081, %v1156
        %v1160 = vxor.u32 %v1159, 2147483648
        %v1161 = vmul.f32 %v1160, 1.442695
        %v1162 = vpow.pop %v1161
        %v1163 = vadd.f32 %v1162, 1.0
        %v1164 = vrcp.pop %v1163
        %v1165 = vmul.f32 1.0, %v1164
        %1167 = vrot.lane.b32.xlu0 %v1156, 64
        %v1168 = vpop.permute.xlu0 %1167
        %v1170 = vmul.f32 %v1165, %v1168
        %1172 = vrot.lane.b32.xlu0 %v1170, 64
        %v1173 = vpop.permute.xlu0 %1172
        %v1175 = vadd.f32 %v1081, %v1173
        %v1176 = vtanh.pop %v1175
        %v1177 = vsub.f32 1.0, %v1165
        %1179 = vrot.lane.b32.xlu0 %v1176, 96
        %v1180 = vpop.permute.xlu0 %1179
        %v1182 = vmul.f32 %v1177, %v1180
        %v1183 = vmul.f32 %v1165, %v1009
        %v1184 = vadd.f32 %v1182, %v1183
        %1185 = vrot.lane.b32.xlu0 %v638, 32
        %v1186 = vpop.permute.xlu0 %1185
        %v1187 = vsel %vm656, %v1186, 0
        %1189 = vmatprep.subr.mxu0 0.0
        %1190 = vmatpush1.msra.mxu0 %v640
        %1191 = vmatprep.subr.mxu0 0.0
        %1192 = vmatpush1.msra.mxu0 %v641
        %1193 = vmatprep.subr.mxu0 0.0
        %1194 = vmatpush1.msra.mxu0 %v642
        %1195 = vmatprep.subr.mxu0 0.0
        %1196 = vmatpush1.msra.mxu0 %v643
        %1197 = vmatprep.subr.mxu0 0.0
        %1198 = vmatpush1.msra.mxu0 0.0
        %1199 = vmatprep.subr.mxu0 0.0
        %1200 = vmatpush1.msra.mxu0 0.0
        %1201 = vmatprep.subr.mxu0 0.0
        %1202 = vmatpush1.msra.mxu0 0.0
        %1203 = vmatprep.subr.mxu0 0.0
        %1204 = vmatpush1.msra.mxu0 0.0
        %1205 = vmatprep.subr.mxu0 0.0
        %1206 = vmatpush1.msra.mxu0 0.0
        %1207 = vmatprep.subr.mxu0 0.0
        %1208 = vmatpush1.msra.mxu0 0.0
        %1209 = vmatprep.subr.mxu0 0.0
        %1210 = vmatpush1.msra.mxu0 0.0
        %1211 = vmatprep.subr.mxu0 0.0
        %1212 = vmatpush1.msra.mxu0 0.0
        %1213 = vmatprep.subr.mxu0 0.0
        %1214 = vmatpush1.msra.mxu0 0.0
        %1215 = vmatprep.subr.mxu0 0.0
        %1216 = vmatpush1.msra.mxu0 0.0
        %1217 = vmatprep.subr.mxu0 0.0
        %1218 = vmatpush1.msra.mxu0 0.0
        %1219 = vmatprep.subr.mxu0 0.0
        %1220 = vmatpush1.msra.mxu0 0.0
        %1221 = vmatprep.subr.mxu0 0.0
        %1222 = vmatpush1.msra.mxu0 0.0
        %1223 = vmatprep.subr.mxu0 0.0
        %1224 = vmatpush1.msra.mxu0 0.0
        %1225 = vmatprep.subr.mxu0 0.0
        %1226 = vmatpush1.msra.mxu0 0.0
        %1227 = vmatprep.subr.mxu0 0.0
        %1228 = vmatpush1.msra.mxu0 0.0
        %1229 = vmatprep.subr.mxu0 0.0
        %1230 = vmatpush1.msra.mxu0 0.0
        %1231 = vmatprep.subr.mxu0 0.0
        %1232 = vmatpush1.msra.mxu0 0.0
        %1233 = vmatprep.subr.mxu0 0.0
        %1234 = vmatpush1.msra.mxu0 0.0
        %1235 = vmatprep.subr.mxu0 0.0
        %1236 = vmatpush1.msra.mxu0 0.0
        %1237 = vmatprep.subr.mxu0 0.0
        %1238 = vmatpush1.msra.mxu0 0.0
        %1239 = vmatprep.subr.mxu0 0.0
        %1240 = vmatpush1.msra.mxu0 0.0
        %1241 = vmatprep.subr.mxu0 0.0
        %1242 = vmatpush1.msra.mxu0 0.0
        %1243 = vmatprep.subr.mxu0 0.0
        %1244 = vmatpush1.msra.mxu0 0.0
        %1245 = vmatprep.subr.mxu0 0.0
        %1246 = vmatpush1.msra.mxu0 0.0
        %1247 = vmatprep.subr.mxu0 0.0
        %1248 = vmatpush1.msra.mxu0 0.0
        %1249 = vmatprep.subr.mxu0 0.0
        %1250 = vmatpush1.msra.mxu0 0.0
        %1251 = vmatprep.subr.mxu0 0.0
        %1252 = vmatpush1.msra.mxu0 0.0
        %1253 = vmatprep.mubr.f32.mxu0 0.0
        %1254 = vmatmul.mubr.f32.gmra.mrb[0].mxu0 %v1187
        %v1255 = vpop.f32.mrb[0].mxu0
        %v1256 = vadd.f32 %v654, %v1255
        %v1257 = vpop.f32.mrb[0].mxu0
        %1258 = vdwg.mxu0
        %1260 = vrot.lane.b32.xlu0 %v1184, 96
        %v1261 = vpop.permute.xlu0 %1260
        %v1262 = vsel %vm656, %v1261, 0
        %1264 = vmatprep.subr.mxu0 0.0
        %1265 = vmatpush1.msra.mxu0 %v645
        %1266 = vmatprep.subr.mxu0 0.0
        %1267 = vmatpush1.msra.mxu0 %v646
        %1268 = vmatprep.subr.mxu0 0.0
        %1269 = vmatpush1.msra.mxu0 %v647
        %1270 = vmatprep.subr.mxu0 0.0
        %1271 = vmatpush1.msra.mxu0 %v648
        %1272 = vmatprep.subr.mxu0 0.0
        %1273 = vmatpush1.msra.mxu0 0.0
        %1274 = vmatprep.subr.mxu0 0.0
        %1275 = vmatpush1.msra.mxu0 0.0
        %1276 = vmatprep.subr.mxu0 0.0
        %1277 = vmatpush1.msra.mxu0 0.0
        %1278 = vmatprep.subr.mxu0 0.0
        %1279 = vmatpush1.msra.mxu0 0.0
        %1280 = vmatprep.subr.mxu0 0.0
        %1281 = vmatpush1.msra.mxu0 0.0
        %1282 = vmatprep.subr.mxu0 0.0
        %1283 = vmatpush1.msra.mxu0 0.0
        %1284 = vmatprep.subr.mxu0 0.0
        %1285 = vmatpush1.msra.mxu0 0.0
        %1286 = vmatprep.subr.mxu0 0.0
        %1287 = vmatpush1.msra.mxu0 0.0
        %1288 = vmatprep.subr.mxu0 0.0
        %1289 = vmatpush1.msra.mxu0 0.0
        %1290 = vmatprep.subr.mxu0 0.0
        %1291 = vmatpush1.msra.mxu0 0.0
        %1292 = vmatprep.subr.mxu0 0.0
        %1293 = vmatpush1.msra.mxu0 0.0
        %1294 = vmatprep.subr.mxu0 0.0
        %1295 = vmatpush1.msra.mxu0 0.0
        %1296 = vmatprep.subr.mxu0 0.0
        %1297 = vmatpush1.msra.mxu0 0.0
        %1298 = vmatprep.subr.mxu0 0.0
        %1299 = vmatpush1.msra.mxu0 0.0
        %1300 = vmatprep.subr.mxu0 0.0
        %1301 = vmatpush1.msra.mxu0 0.0
        %1302 = vmatprep.subr.mxu0 0.0
        %1303 = vmatpush1.msra.mxu0 0.0
        %1304 = vmatprep.subr.mxu0 0.0
        %1305 = vmatpush1.msra.mxu0 0.0
        %1306 = vmatprep.subr.mxu0 0.0
        %1307 = vmatpush1.msra.mxu0 0.0
        %1308 = vmatprep.subr.mxu0 0.0
        %1309 = vmatpush1.msra.mxu0 0.0
        %1310 = vmatprep.subr.mxu0 0.0
        %1311 = vmatpush1.msra.mxu0 0.0
        %1312 = vmatprep.subr.mxu0 0.0
        %1313 = vmatpush1.msra.mxu0 0.0
        %1314 = vmatprep.subr.mxu0 0.0
        %1315 = vmatpush1.msra.mxu0 0.0
        %1316 = vmatprep.subr.mxu0 0.0
        %1317 = vmatpush1.msra.mxu0 0.0
        %1318 = vmatprep.subr.mxu0 0.0
        %1319 = vmatpush1.msra.mxu0 0.0
        %1320 = vmatprep.subr.mxu0 0.0
        %1321 = vmatpush1.msra.mxu0 0.0
        %1322 = vmatprep.subr.mxu0 0.0
        %1323 = vmatpush1.msra.mxu0 0.0
        %1324 = vmatprep.subr.mxu0 0.0
        %1325 = vmatpush1.msra.mxu0 0.0
        %1326 = vmatprep.subr.mxu0 0.0
        %1327 = vmatpush1.msra.mxu0 0.0
        %1328 = vmatprep.mubr.f32.mxu0 0.0
        %1329 = vmatmul.mubr.f32.gmra.mrb[0].mxu0 %v1262
        %v1330 = vpop.f32.mrb[0].mxu0
        %v1331 = vadd.f32 %v734, %v1330
        %v1332 = vpop.f32.mrb[0].mxu0
        %1333 = vdwg.mxu0
        %v1334 = vadd.f32 %v1256, %v1331
        %v1335 = vxor.u32 %v1334, 2147483648
        %v1336 = vmul.f32 %v1335, 1.442695
        %v1337 = vpow.pop %v1336
        %v1338 = vadd.f32 %v1337, 1.0
        %v1339 = vrcp.pop %v1338
        %v1340 = vmul.f32 1.0, %v1339
        %1342 = vrot.lane.b32.xlu0 %v1331, 64
        %v1343 = vpop.permute.xlu0 %1342
        %v1345 = vmul.f32 %v1340, %v1343
        %1347 = vrot.lane.b32.xlu0 %v1345, 64
        %v1348 = vpop.permute.xlu0 %1347
        %v1350 = vadd.f32 %v1256, %v1348
        %v1351 = vtanh.pop %v1350
        %v1352 = vsub.f32 1.0, %v1340
        %1354 = vrot.lane.b32.xlu0 %v1351, 96
        %v1355 = vpop.permute.xlu0 %1354
        %v1357 = vmul.f32 %v1352, %v1355
        %v1358 = vmul.f32 %v1340, %v1184
        %v1359 = vadd.f32 %v1357, %v1358
        %v1361 = vsel %vm656, %v639, 0
        %1363 = vmatprep.subr.mxu0 0.0
        %1364 = vmatpush1.msra.mxu0 %v640
        %1365 = vmatprep.subr.mxu0 0.0
        %1366 = vmatpush1.msra.mxu0 %v641
        %1367 = vmatprep.subr.mxu0 0.0
        %1368 = vmatpush1.msra.mxu0 %v642
        %1369 = vmatprep.subr.mxu0 0.0
        %1370 = vmatpush1.msra.mxu0 %v643
        %1371 = vmatprep.subr.mxu0 0.0
        %1372 = vmatpush1.msra.mxu0 0.0
        %1373 = vmatprep.subr.mxu0 0.0
        %1374 = vmatpush1.msra.mxu0 0.0
        %1375 = vmatprep.subr.mxu0 0.0
        %1376 = vmatpush1.msra.mxu0 0.0
        %1377 = vmatprep.subr.mxu0 0.0
        %1378 = vmatpush1.msra.mxu0 0.0
        %1379 = vmatprep.subr.mxu0 0.0
        %1380 = vmatpush1.msra.mxu0 0.0
        %1381 = vmatprep.subr.mxu0 0.0
        %1382 = vmatpush1.msra.mxu0 0.0
        %1383 = vmatprep.subr.mxu0 0.0
        %1384 = vmatpush1.msra.mxu0 0.0
        %1385 = vmatprep.subr.mxu0 0.0
        %1386 = vmatpush1.msra.mxu0 0.0
        %1387 = vmatprep.subr.mxu0 0.0
        %1388 = vmatpush1.msra.mxu0 0.0
        %1389 = vmatprep.subr.mxu0 0.0
        %1390 = vmatpush1.msra.mxu0 0.0
        %1391 = vmatprep.subr.mxu0 0.0
        %1392 = vmatpush1.msra.mxu0 0.0
        %1393 = vmatprep.subr.mxu0 0.0
        %1394 = vmatpush1.msra.mxu0 0.0
        %1395 = vmatprep.subr.mxu0 0.0
        %1396 = vmatpush1.msra.mxu0 0.0
        %1397 = vmatprep.subr.mxu0 0.0
        %1398 = vmatpush1.msra.mxu0 0.0
        %1399 = vmatprep.subr.mxu0 0.0
        %1400 = vmatpush1.msra.mxu0 0.0
        %1401 = vmatprep.subr.mxu0 0.0
        %1402 = vmatpush1.msra.mxu0 0.0
        %1403 = vmatprep.subr.mxu0 0.0
        %1404 = vmatpush1.msra.mxu0 0.0
        %1405 = vmatprep.subr.mxu0 0.0
        %1406 = vmatpush1.msra.mxu0 0.0
        %1407 = vmatprep.subr.mxu0 0.0
        %1408 = vmatpush1.msra.mxu0 0.0
        %1409 = vmatprep.subr.mxu0 0.0
        %1410 = vmatpush1.msra.mxu0 0.0
        %1411 = vmatprep.subr.mxu0 0.0
        %1412 = vmatpush1.msra.mxu0 0.0
        %1413 = vmatprep.subr.mxu0 0.0
        %1414 = vmatpush1.msra.mxu0 0.0
        %1415 = vmatprep.subr.mxu0 0.0
        %1416 = vmatpush1.msra.mxu0 0.0
        %1417 = vmatprep.subr.mxu0 0.0
        %1418 = vmatpush1.msra.mxu0 0.0
        %1419 = vmatprep.subr.mxu0 0.0
        %1420 = vmatpush1.msra.mxu0 0.0
        %1421 = vmatprep.subr.mxu0 0.0
        %1422 = vmatpush1.msra.mxu0 0.0
        %1423 = vmatprep.subr.mxu0 0.0
        %1424 = vmatpush1.msra.mxu0 0.0
        %1425 = vmatprep.subr.mxu0 0.0
        %1426 = vmatpush1.msra.mxu0 0.0
        %1427 = vmatprep.mubr.f32.mxu0 0.0
        %1428 = vmatmul.mubr.f32.gmra.mrb[0].mxu0 %v1361
        %v1429 = vpop.f32.mrb[0].mxu0
        %v1430 = vadd.f32 %v654, %v1429
        %v1431 = vpop.f32.mrb[0].mxu0
        %1432 = vdwg.mxu0
        %1434 = vrot.lane.b32.xlu0 %v1359, 96
        %v1435 = vpop.permute.xlu0 %1434
        %v1436 = vsel %vm656, %v1435, 0
        %1438 = vmatprep.subr.mxu0 0.0
        %1439 = vmatpush1.msra.mxu0 %v645
        %1440 = vmatprep.subr.mxu0 0.0
        %1441 = vmatpush1.msra.mxu0 %v646
        %1442 = vmatprep.subr.mxu0 0.0
        %1443 = vmatpush1.msra.mxu0 %v647
        %1444 = vmatprep.subr.mxu0 0.0
        %1445 = vmatpush1.msra.mxu0 %v648
        %1446 = vmatprep.subr.mxu0 0.0
        %1447 = vmatpush1.msra.mxu0 0.0
        %1448 = vmatprep.subr.mxu0 0.0
        %1449 = vmatpush1.msra.mxu0 0.0
        %1450 = vmatprep.subr.mxu0 0.0
        %1451 = vmatpush1.msra.mxu0 0.0
        %1452 = vmatprep.subr.mxu0 0.0
        %1453 = vmatpush1.msra.mxu0 0.0
        %1454 = vmatprep.subr.mxu0 0.0
        %1455 = vmatpush1.msra.mxu0 0.0
        %1456 = vmatprep.subr.mxu0 0.0
        %1457 = vmatpush1.msra.mxu0 0.0
        %1458 = vmatprep.subr.mxu0 0.0
        %1459 = vmatpush1.msra.mxu0 0.0
        %1460 = vmatprep.subr.mxu0 0.0
        %1461 = vmatpush1.msra.mxu0 0.0
        %1462 = vmatprep.subr.mxu0 0.0
        %1463 = vmatpush1.msra.mxu0 0.0
        %1464 = vmatprep.subr.mxu0 0.0
        %1465 = vmatpush1.msra.mxu0 0.0
        %1466 = vmatprep.subr.mxu0 0.0
        %1467 = vmatpush1.msra.mxu0 0.0
        %1468 = vmatprep.subr.mxu0 0.0
        %1469 = vmatpush1.msra.mxu0 0.0
        %1470 = vmatprep.subr.mxu0 0.0
        %1471 = vmatpush1.msra.mxu0 0.0
        %1472 = vmatprep.subr.mxu0 0.0
        %1473 = vmatpush1.msra.mxu0 0.0
        %1474 = vmatprep.subr.mxu0 0.0
        %1475 = vmatpush1.msra.mxu0 0.0
        %1476 = vmatprep.subr.mxu0 0.0
        %1477 = vmatpush1.msra.mxu0 0.0
        %1478 = vmatprep.subr.mxu0 0.0
        %1479 = vmatpush1.msra.mxu0 0.0
        %1480 = vmatprep.subr.mxu0 0.0
        %1481 = vmatpush1.msra.mxu0 0.0
        %1482 = vmatprep.subr.mxu0 0.0
        %1483 = vmatpush1.msra.mxu0 0.0
        %1484 = vmatprep.subr.mxu0 0.0
        %1485 = vmatpush1.msra.mxu0 0.0
        %1486 = vmatprep.subr.mxu0 0.0
        %1487 = vmatpush1.msra.mxu0 0.0
        %1488 = vmatprep.subr.mxu0 0.0
        %1489 = vmatpush1.msra.mxu0 0.0
        %1490 = vmatprep.subr.mxu0 0.0
        %1491 = vmatpush1.msra.mxu0 0.0
        %1492 = vmatprep.subr.mxu0 0.0
        %1493 = vmatpush1.msra.mxu0 0.0
        %1494 = vmatprep.subr.mxu0 0.0
        %1495 = vmatpush1.msra.mxu0 0.0
        %1496 = vmatprep.subr.mxu0 0.0
        %1497 = vmatpush1.msra.mxu0 0.0
        %1498 = vmatprep.subr.mxu0 0.0
        %1499 = vmatpush1.msra.mxu0 0.0
        %1500 = vmatprep.subr.mxu0 0.0
        %1501 = vmatpush1.msra.mxu0 0.0
        %1502 = vmatprep.mubr.f32.mxu0 0.0
        %1503 = vmatmul.mubr.f32.gmra.mrb[0].mxu0 %v1436
        %v1504 = vpop.f32.mrb[0].mxu0
        %v1505 = vadd.f32 %v734, %v1504
        %v1506 = vpop.f32.mrb[0].mxu0
        %1507 = vdwg.mxu0
        %v1508 = vadd.f32 %v1430, %v1505
        %v1509 = vxor.u32 %v1508, 2147483648
        %v1510 = vmul.f32 %v1509, 1.442695
        %v1511 = vpow.pop %v1510
        %v1512 = vadd.f32 %v1511, 1.0
        %v1513 = vrcp.pop %v1512
        %v1514 = vmul.f32 1.0, %v1513
        %1516 = vrot.lane.b32.xlu0 %v1505, 64
        %v1517 = vpop.permute.xlu0 %1516
        %v1519 = vmul.f32 %v1514, %v1517
        %1521 = vrot.lane.b32.xlu0 %v1519, 64
        %v1522 = vpop.permute.xlu0 %1521
        %v1524 = vadd.f32 %v1430, %v1522
        %v1525 = vtanh.pop %v1524
        %v1526 = vsub.f32 1.0, %v1514
        %1528 = vrot.lane.b32.xlu0 %v1525, 96
        %v1529 = vpop.permute.xlu0 %1528
        %v1531 = vmul.f32 %v1526, %v1529
        %v1532 = vmul.f32 %v1514, %v1359
        %v1533 = vadd.f32 %v1531, %v1532
        %1534 = vrot.lane.b32.xlu0 %v639, 96
        %v1535 = vpop.permute.xlu0 %1534
        %v1536 = vsel %vm656, %v1535, 0
        %1538 = vmatprep.subr.mxu0 0.0
        %1539 = vmatpush1.msra.mxu0 %v640
        %1540 = vmatprep.subr.mxu0 0.0
        %1541 = vmatpush1.msra.mxu0 %v641
        %1542 = vmatprep.subr.mxu0 0.0
        %1543 = vmatpush1.msra.mxu0 %v642
        %1544 = vmatprep.subr.mxu0 0.0
        %1545 = vmatpush1.msra.mxu0 %v643
        %1546 = vmatprep.subr.mxu0 0.0
        %1547 = vmatpush1.msra.mxu0 0.0
        %1548 = vmatprep.subr.mxu0 0.0
        %1549 = vmatpush1.msra.mxu0 0.0
        %1550 = vmatprep.subr.mxu0 0.0
        %1551 = vmatpush1.msra.mxu0 0.0
        %1552 = vmatprep.subr.mxu0 0.0
        %1553 = vmatpush1.msra.mxu0 0.0
        %1554 = vmatprep.subr.mxu0 0.0
        %1555 = vmatpush1.msra.mxu0 0.0
        %1556 = vmatprep.subr.mxu0 0.0
        %1557 = vmatpush1.msra.mxu0 0.0
        %1558 = vmatprep.subr.mxu0 0.0
        %1559 = vmatpush1.msra.mxu0 0.0
        %1560 = vmatprep.subr.mxu0 0.0
        %1561 = vmatpush1.msra.mxu0 0.0
        %1562 = vmatprep.subr.mxu0 0.0
        %1563 = vmatpush1.msra.mxu0 0.0
        %1564 = vmatprep.subr.mxu0 0.0
        %1565 = vmatpush1.msra.mxu0 0.0
        %1566 = vmatprep.subr.mxu0 0.0
        %1567 = vmatpush1.msra.mxu0 0.0
        %1568 = vmatprep.subr.mxu0 0.0
        %1569 = vmatpush1.msra.mxu0 0.0
        %1570 = vmatprep.subr.mxu0 0.0
        %1571 = vmatpush1.msra.mxu0 0.0
        %1572 = vmatprep.subr.mxu0 0.0
        %1573 = vmatpush1.msra.mxu0 0.0
        %1574 = vmatprep.subr.mxu0 0.0
        %1575 = vmatpush1.msra.mxu0 0.0
        %1576 = vmatprep.subr.mxu0 0.0
        %1577 = vmatpush1.msra.mxu0 0.0
        %1578 = vmatprep.subr.mxu0 0.0
        %1579 = vmatpush1.msra.mxu0 0.0
        %1580 = vmatprep.subr.mxu0 0.0
        %1581 = vmatpush1.msra.mxu0 0.0
        %1582 = vmatprep.subr.mxu0 0.0
        %1583 = vmatpush1.msra.mxu0 0.0
        %1584 = vmatprep.subr.mxu0 0.0
        %1585 = vmatpush1.msra.mxu0 0.0
        %1586 = vmatprep.subr.mxu0 0.0
        %1587 = vmatpush1.msra.mxu0 0.0
        %1588 = vmatprep.subr.mxu0 0.0
        %1589 = vmatpush1.msra.mxu0 0.0
        %1590 = vmatprep.subr.mxu0 0.0
        %1591 = vmatpush1.msra.mxu0 0.0
        %1592 = vmatprep.subr.mxu0 0.0
        %1593 = vmatpush1.msra.mxu0 0.0
        %1594 = vmatprep.subr.mxu0 0.0
        %1595 = vmatpush1.msra.mxu0 0.0
        %1596 = vmatprep.subr.mxu0 0.0
        %1597 = vmatpush1.msra.mxu0 0.0
        %1598 = vmatprep.subr.mxu0 0.0
        %1599 = vmatpush1.msra.mxu0 0.0
        %1600 = vmatprep.subr.mxu0 0.0
        %1601 = vmatpush1.msra.mxu0 0.0
        %1602 = vmatprep.mubr.f32.mxu0 0.0
        %1603 = vmatmul.mubr.f32.gmra.mrb[0].mxu0 %v1536
        %v1604 = vpop.f32.mrb[0].mxu0
        %v1605 = vadd.f32 %v654, %v1604
        %v1606 = vpop.f32.mrb[0].mxu0
        %1607 = vdwg.mxu0
        %1609 = vrot.lane.b32.xlu0 %v1533, 96
        %v1610 = vpop.permute.xlu0 %1609
        %v1611 = vsel %vm656, %v1610, 0
        %1613 = vmatprep.subr.mxu0 0.0
        %1614 = vmatpush1.msra.mxu0 %v645
        %1615 = vmatprep.subr.mxu0 0.0
        %1616 = vmatpush1.msra.mxu0 %v646
        %1617 = vmatprep.subr.mxu0 0.0
        %1618 = vmatpush1.msra.mxu0 %v647
        %1619 = vmatprep.subr.mxu0 0.0
        %1620 = vmatpush1.msra.mxu0 %v648
        %1621 = vmatprep.subr.mxu0 0.0
        %1622 = vmatpush1.msra.mxu0 0.0
        %1623 = vmatprep.subr.mxu0 0.0
        %1624 = vmatpush1.msra.mxu0 0.0
        %1625 = vmatprep.subr.mxu0 0.0
        %1626 = vmatpush1.msra.mxu0 0.0
        %1627 = vmatprep.subr.mxu0 0.0
        %1628 = vmatpush1.msra.mxu0 0.0
        %1629 = vmatprep.subr.mxu0 0.0
        %1630 = vmatpush1.msra.mxu0 0.0
        %1631 = vmatprep.subr.mxu0 0.0
        %1632 = vmatpush1.msra.mxu0 0.0
        %1633 = vmatprep.subr.mxu0 0.0
        %1634 = vmatpush1.msra.mxu0 0.0
        %1635 = vmatprep.subr.mxu0 0.0
        %1636 = vmatpush1.msra.mxu0 0.0
        %1637 = vmatprep.subr.mxu0 0.0
        %1638 = vmatpush1.msra.mxu0 0.0
        %1639 = vmatprep.subr.mxu0 0.0
        %1640 = vmatpush1.msra.mxu0 0.0
        %1641 = vmatprep.subr.mxu0 0.0
        %1642 = vmatpush1.msra.mxu0 0.0
        %1643 = vmatprep.subr.mxu0 0.0
        %1644 = vmatpush1.msra.mxu0 0.0
        %1645 = vmatprep.subr.mxu0 0.0
        %1646 = vmatpush1.msra.mxu0 0.0
        %1647 = vmatprep.subr.mxu0 0.0
        %1648 = vmatpush1.msra.mxu0 0.0
        %1649 = vmatprep.subr.mxu0 0.0
        %1650 = vmatpush1.msra.mxu0 0.0
        %1651 = vmatprep.subr.mxu0 0.0
        %1652 = vmatpush1.msra.mxu0 0.0
        %1653 = vmatprep.subr.mxu0 0.0
        %1654 = vmatpush1.msra.mxu0 0.0
        %1655 = vmatprep.subr.mxu0 0.0
        %1656 = vmatpush1.msra.mxu0 0.0
        %1657 = vmatprep.subr.mxu0 0.0
        %1658 = vmatpush1.msra.mxu0 0.0
        %1659 = vmatprep.subr.mxu0 0.0
        %1660 = vmatpush1.msra.mxu0 0.0
        %1661 = vmatprep.subr.mxu0 0.0
        %1662 = vmatpush1.msra.mxu0 0.0
        %1663 = vmatprep.subr.mxu0 0.0
        %1664 = vmatpush1.msra.mxu0 0.0
        %1665 = vmatprep.subr.mxu0 0.0
        %1666 = vmatpush1.msra.mxu0 0.0
        %1667 = vmatprep.subr.mxu0 0.0
        %1668 = vmatpush1.msra.mxu0 0.0
        %1669 = vmatprep.subr.mxu0 0.0
        %1670 = vmatpush1.msra.mxu0 0.0
        %1671 = vmatprep.subr.mxu0 0.0
        %1672 = vmatpush1.msra.mxu0 0.0
        %1673 = vmatprep.subr.mxu0 0.0
        %1674 = vmatpush1.msra.mxu0 0.0
        %1675 = vmatprep.subr.mxu0 0.0
        %1676 = vmatpush1.msra.mxu0 0.0
        %1677 = vmatprep.mubr.f32.mxu0 0.0
        %1678 = vmatmul.mubr.f32.gmra.mrb[0].mxu0 %v1611
        %v1679 = vpop.f32.mrb[0].mxu0
        %v1680 = vadd.f32 %v734, %v1679
        %v1681 = vpop.f32.mrb[0].mxu0
        %1682 = vdwg.mxu0
        %v1683 = vadd.f32 %v1605, %v1680
        %v1684 = vxor.u32 %v1683, 2147483648
        %v1685 = vmul.f32 %v1684, 1.442695
        %v1686 = vpow.pop %v1685
        %v1687 = vadd.f32 %v1686, 1.0
        %v1688 = vrcp.pop %v1687
        %v1689 = vmul.f32 1.0, %v1688
        %1691 = vrot.lane.b32.xlu0 %v1680, 64
        %v1692 = vpop.permute.xlu0 %1691
        %v1694 = vmul.f32 %v1689, %v1692
        %1696 = vrot.lane.b32.xlu0 %v1694, 64
        %v1697 = vpop.permute.xlu0 %1696
        %v1699 = vadd.f32 %v1605, %v1697
        %v1700 = vtanh.pop %v1699
        %v1701 = vsub.f32 1.0, %v1689
        %1703 = vrot.lane.b32.xlu0 %v1700, 96
        %v1704 = vpop.permute.xlu0 %1703
        %v1706 = vmul.f32 %v1701, %v1704
        %v1707 = vmul.f32 %v1689, %v1533
        %v1708 = vadd.f32 %v1706, %v1707
        %v1709 = vld [vmem:[%s431] sm:$0xff]
        %v1710 = vld [vmem:[%s9] sm:$0xff]
        %v1711 = vld [vmem:[%s9 + $0x8] sm:$0xff]
        %v1712 = vld [vmem:[%s9 + $0x10] sm:$0xff]
        %v1713 = vld [vmem:[%s9 + $0x18] sm:$0xff]
        %v1714 = vld [vmem:[%s10] sm:$0x1]
        %v1716 = vsel %vm656, %v1709, 0
        %1718 = vmatprep.subr.mxu0 0.0
        %1719 = vmatpush1.msra.mxu0 %v640
        %1720 = vmatprep.subr.mxu0 0.0
        %1721 = vmatpush1.msra.mxu0 %v641
        %1722 = vmatprep.subr.mxu0 0.0
        %1723 = vmatpush1.msra.mxu0 %v642
        %1724 = vmatprep.subr.mxu0 0.0
        %1725 = vmatpush1.msra.mxu0 %v643
        %1726 = vmatprep.subr.mxu0 0.0
        %1727 = vmatpush1.msra.mxu0 0.0
        %1728 = vmatprep.subr.mxu0 0.0
        %1729 = vmatpush1.msra.mxu0 0.0
        %1730 = vmatprep.subr.mxu0 0.0
        %1731 = vmatpush1.msra.mxu0 0.0
        %1732 = vmatprep.subr.mxu0 0.0
        %1733 = vmatpush1.msra.mxu0 0.0
        %1734 = vmatprep.subr.mxu0 0.0
        %1735 = vmatpush1.msra.mxu0 0.0
        %1736 = vmatprep.subr.mxu0 0.0
        %1737 = vmatpush1.msra.mxu0 0.0
        %1738 = vmatprep.subr.mxu0 0.0
        %1739 = vmatpush1.msra.mxu0 0.0
        %1740 = vmatprep.subr.mxu0 0.0
        %1741 = vmatpush1.msra.mxu0 0.0
        %1742 = vmatprep.subr.mxu0 0.0
        %1743 = vmatpush1.msra.mxu0 0.0
        %1744 = vmatprep.subr.mxu0 0.0
        %1745 = vmatpush1.msra.mxu0 0.0
        %1746 = vmatprep.subr.mxu0 0.0
        %1747 = vmatpush1.msra.mxu0 0.0
        %1748 = vmatprep.subr.mxu0 0.0
        %1749 = vmatpush1.msra.mxu0 0.0
        %1750 = vmatprep.subr.mxu0 0.0
        %1751 = vmatpush1.msra.mxu0 0.0
        %1752 = vmatprep.subr.mxu0 0.0
        %1753 = vmatpush1.msra.mxu0 0.0
        %1754 = vmatprep.subr.mxu0 0.0
        %1755 = vmatpush1.msra.mxu0 0.0
        %1756 = vmatprep.subr.mxu0 0.0
        %1757 = vmatpush1.msra.mxu0 0.0
        %1758 = vmatprep.subr.mxu0 0.0
        %1759 = vmatpush1.msra.mxu0 0.0
        %1760 = vmatprep.subr.mxu0 0.0
        %1761 = vmatpush1.msra.mxu0 0.0
        %1762 = vmatprep.subr.mxu0 0.0
        %1763 = vmatpush1.msra.mxu0 0.0
        %1764 = vmatprep.subr.mxu0 0.0
        %1765 = vmatpush1.msra.mxu0 0.0
        %1766 = vmatprep.subr.mxu0 0.0
        %1767 = vmatpush1.msra.mxu0 0.0
        %1768 = vmatprep.subr.mxu0 0.0
        %1769 = vmatpush1.msra.mxu0 0.0
        %1770 = vmatprep.subr.mxu0 0.0
        %1771 = vmatpush1.msra.mxu0 0.0
        %1772 = vmatprep.subr.mxu0 0.0
        %1773 = vmatpush1.msra.mxu0 0.0
        %1774 = vmatprep.subr.mxu0 0.0
        %1775 = vmatpush1.msra.mxu0 0.0
        %1776 = vmatprep.subr.mxu0 0.0
        %1777 = vmatpush1.msra.mxu0 0.0
        %1778 = vmatprep.subr.mxu0 0.0
        %1779 = vmatpush1.msra.mxu0 0.0
        %1780 = vmatprep.subr.mxu0 0.0
        %1781 = vmatpush1.msra.mxu0 0.0
        %1782 = vmatprep.mubr.f32.mxu0 0.0
        %1783 = vmatmul.mubr.f32.gmra.mrb[0].mxu0 %v1716
        %v1784 = vpop.f32.mrb[0].mxu0
        %v1785 = vadd.f32 %v654, %v1784
        %v1786 = vpop.f32.mrb[0].mxu0
        %1787 = vdwg.mxu0
        %1789 = vrot.lane.b32.xlu0 %v1708, 96
        %v1790 = vpop.permute.xlu0 %1789
        %v1791 = vsel %vm656, %v1790, 0
        %1793 = vmatprep.subr.mxu0 0.0
        %1794 = vmatpush1.msra.mxu0 %v645
        %1795 = vmatprep.subr.mxu0 0.0
        %1796 = vmatpush1.msra.mxu0 %v646
        %1797 = vmatprep.subr.mxu0 0.0
        %1798 = vmatpush1.msra.mxu0 %v647
        %1799 = vmatprep.subr.mxu0 0.0
        %1800 = vmatpush1.msra.mxu0 %v648
        %1801 = vmatprep.subr.mxu0 0.0
        %1802 = vmatpush1.msra.mxu0 0.0
        %1803 = vmatprep.subr.mxu0 0.0
        %1804 = vmatpush1.msra.mxu0 0.0
        %1805 = vmatprep.subr.mxu0 0.0
        %1806 = vmatpush1.msra.mxu0 0.0
        %1807 = vmatprep.subr.mxu0 0.0
        %1808 = vmatpush1.msra.mxu0 0.0
        %1809 = vmatprep.subr.mxu0 0.0
        %1810 = vmatpush1.msra.mxu0 0.0
        %1811 = vmatprep.subr.mxu0 0.0
        %1812 = vmatpush1.msra.mxu0 0.0
        %1813 = vmatprep.subr.mxu0 0.0
        %1814 = vmatpush1.msra.mxu0 0.0
        %1815 = vmatprep.subr.mxu0 0.0
        %1816 = vmatpush1.msra.mxu0 0.0
        %1817 = vmatprep.subr.mxu0 0.0
        %1818 = vmatpush1.msra.mxu0 0.0
        %1819 = vmatprep.subr.mxu0 0.0
        %1820 = vmatpush1.msra.mxu0 0.0
        %1821 = vmatprep.subr.mxu0 0.0
        %1822 = vmatpush1.msra.mxu0 0.0
        %1823 = vmatprep.subr.mxu0 0.0
        %1824 = vmatpush1.msra.mxu0 0.0
        %1825 = vmatprep.subr.mxu0 0.0
        %1826 = vmatpush1.msra.mxu0 0.0
        %1827 = vmatprep.subr.mxu0 0.0
        %1828 = vmatpush1.msra.mxu0 0.0
        %1829 = vmatprep.subr.mxu0 0.0
        %1830 = vmatpush1.msra.mxu0 0.0
        %1831 = vmatprep.subr.mxu0 0.0
        %1832 = vmatpush1.msra.mxu0 0.0
        %1833 = vmatprep.subr.mxu0 0.0
        %1834 = vmatpush1.msra.mxu0 0.0
        %1835 = vmatprep.subr.mxu0 0.0
        %1836 = vmatpush1.msra.mxu0 0.0
        %1837 = vmatprep.subr.mxu0 0.0
        %1838 = vmatpush1.msra.mxu0 0.0
        %1839 = vmatprep.subr.mxu0 0.0
        %1840 = vmatpush1.msra.mxu0 0.0
        %1841 = vmatprep.subr.mxu0 0.0
        %1842 = vmatpush1.msra.mxu0 0.0
        %1843 = vmatprep.subr.mxu0 0.0
        %1844 = vmatpush1.msra.mxu0 0.0
        %1845 = vmatprep.subr.mxu0 0.0
        %1846 = vmatpush1.msra.mxu0 0.0
        %1847 = vmatprep.subr.mxu0 0.0
        %1848 = vmatpush1.msra.mxu0 0.0
        %1849 = vmatprep.subr.mxu0 0.0
        %1850 = vmatpush1.msra.mxu0 0.0
        %1851 = vmatprep.subr.mxu0 0.0
        %1852 = vmatpush1.msra.mxu0 0.0
        %1853 = vmatprep.subr.mxu0 0.0
        %1854 = vmatpush1.msra.mxu0 0.0
        %1855 = vmatprep.subr.mxu0 0.0
        %1856 = vmatpush1.msra.mxu0 0.0
        %1857 = vmatprep.mubr.f32.mxu0 0.0
        %1858 = vmatmul.mubr.f32.gmra.mrb[0].mxu0 %v1791
        %v1859 = vpop.f32.mrb[0].mxu0
        %v1860 = vadd.f32 %v734, %v1859
        %v1861 = vpop.f32.mrb[0].mxu0
        %1862 = vdwg.mxu0
        %v1863 = vadd.f32 %v1785, %v1860
        %v1864 = vxor.u32 %v1863, 2147483648
        %v1865 = vmul.f32 %v1864, 1.442695
        %v1866 = vpow.pop %v1865
        %v1867 = vadd.f32 %v1866, 1.0
        %v1868 = vrcp.pop %v1867
        %v1869 = vmul.f32 1.0, %v1868
        %1871 = vrot.lane.b32.xlu0 %v1860, 64
        %v1872 = vpop.permute.xlu0 %1871
        %v1874 = vmul.f32 %v1869, %v1872
        %1876 = vrot.lane.b32.xlu0 %v1874, 64
        %v1877 = vpop.permute.xlu0 %1876
        %v1879 = vadd.f32 %v1785, %v1877
        %v1880 = vtanh.pop %v1879
        %v1881 = vsub.f32 1.0, %v1869
        %1883 = vrot.lane.b32.xlu0 %v1880, 96
        %v1884 = vpop.permute.xlu0 %1883
        %v1886 = vmul.f32 %v1881, %v1884
        %v1887 = vmul.f32 %v1869, %v1708
        %v1888 = vadd.f32 %v1886, %v1887
        %v1890 = vlaneseq
        %v1891 = vshrl.u32 %v1890, 7
        %v1892 = vsub.s32 0, %v1891
        %v1893 = vrot.slane %v1714, %v1892
        %1896 = vrot.lane.b32.xlu0 %v1888, 96
        %v1897 = vpop.permute.xlu0 %1896
        %v1898 = vsel %vm656, %v1897, 0
        %1900 = vmatprep.subr.mxu0 0.0
        %1901 = vmatpush1.msra.mxu0 %v1710
        %1902 = vmatprep.subr.mxu0 0.0
        %1903 = vmatpush1.msra.mxu0 %v1711
        %1904 = vmatprep.subr.mxu0 0.0
        %1905 = vmatpush1.msra.mxu0 %v1712
        %1906 = vmatprep.subr.mxu0 0.0
        %1907 = vmatpush1.msra.mxu0 %v1713
        %1908 = vmatprep.subr.mxu0 0.0
        %1909 = vmatpush1.msra.mxu0 0.0
        %1910 = vmatprep.subr.mxu0 0.0
        %1911 = vmatpush1.msra.mxu0 0.0
        %1912 = vmatprep.subr.mxu0 0.0
        %1913 = vmatpush1.msra.mxu0 0.0
        %1914 = vmatprep.subr.mxu0 0.0
        %1915 = vmatpush1.msra.mxu0 0.0
        %1916 = vmatprep.subr.mxu0 0.0
        %1917 = vmatpush1.msra.mxu0 0.0
        %1918 = vmatprep.subr.mxu0 0.0
        %1919 = vmatpush1.msra.mxu0 0.0
        %1920 = vmatprep.subr.mxu0 0.0
        %1921 = vmatpush1.msra.mxu0 0.0
        %1922 = vmatprep.subr.mxu0 0.0
        %1923 = vmatpush1.msra.mxu0 0.0
        %1924 = vmatprep.subr.mxu0 0.0
        %1925 = vmatpush1.msra.mxu0 0.0
        %1926 = vmatprep.subr.mxu0 0.0
        %1927 = vmatpush1.msra.mxu0 0.0
        %1928 = vmatprep.subr.mxu0 0.0
        %1929 = vmatpush1.msra.mxu0 0.0
        %1930 = vmatprep.subr.mxu0 0.0
        %1931 = vmatpush1.msra.mxu0 0.0
        %1932 = vmatprep.subr.mxu0 0.0
        %1933 = vmatpush1.msra.mxu0 0.0
        %1934 = vmatprep.subr.mxu0 0.0
        %1935 = vmatpush1.msra.mxu0 0.0
        %1936 = vmatprep.subr.mxu0 0.0
        %1937 = vmatpush1.msra.mxu0 0.0
        %1938 = vmatprep.subr.mxu0 0.0
        %1939 = vmatpush1.msra.mxu0 0.0
        %1940 = vmatprep.subr.mxu0 0.0
        %1941 = vmatpush1.msra.mxu0 0.0
        %1942 = vmatprep.subr.mxu0 0.0
        %1943 = vmatpush1.msra.mxu0 0.0
        %1944 = vmatprep.subr.mxu0 0.0
        %1945 = vmatpush1.msra.mxu0 0.0
        %1946 = vmatprep.subr.mxu0 0.0
        %1947 = vmatpush1.msra.mxu0 0.0
        %1948 = vmatprep.subr.mxu0 0.0
        %1949 = vmatpush1.msra.mxu0 0.0
        %1950 = vmatprep.subr.mxu0 0.0
        %1951 = vmatpush1.msra.mxu0 0.0
        %1952 = vmatprep.subr.mxu0 0.0
        %1953 = vmatpush1.msra.mxu0 0.0
        %1954 = vmatprep.subr.mxu0 0.0
        %1955 = vmatpush1.msra.mxu0 0.0
        %1956 = vmatprep.subr.mxu0 0.0
        %1957 = vmatpush1.msra.mxu0 0.0
        %1958 = vmatprep.subr.mxu0 0.0
        %1959 = vmatpush1.msra.mxu0 0.0
        %1960 = vmatprep.subr.mxu0 0.0
        %1961 = vmatpush1.msra.mxu0 0.0
        %1962 = vmatprep.subr.mxu0 0.0
        %1963 = vmatpush1.msra.mxu0 0.0
        %1964 = vmatprep.mubr.f32.mxu0 0.0
        %1965 = vmatmul.mubr.f32.gmra.mrb[0].mxu0 %v1898
        %v1966 = vpop.f32.mrb[0].mxu0
        %v1967 = vadd.f32 %v1893, %v1966
        %v1968 = vpop.f32.mrb[0].mxu0
        %1969 = vdwg.mxu0
        %v1970 = vmul.f32 %v1967, %v506
        %v1971 = vadd.f32 %v1970, %v497
        %1972 = vrot.lane.b32.xlu0 %v1709, 96
        %v1973 = vpop.permute.xlu0 %1972
        %v1974 = vsel %vm656, %v1973, 0
        %1976 = vmatprep.subr.mxu0 0.0
        %1977 = vmatpush1.msra.mxu0 %v640
        %1978 = vmatprep.subr.mxu0 0.0
        %1979 = vmatpush1.msra.mxu0 %v641
        %1980 = vmatprep.subr.mxu0 0.0
        %1981 = vmatpush1.msra.mxu0 %v642
        %1982 = vmatprep.subr.mxu0 0.0
        %1983 = vmatpush1.msra.mxu0 %v643
        %1984 = vmatprep.subr.mxu0 0.0
        %1985 = vmatpush1.msra.mxu0 0.0
        %1986 = vmatprep.subr.mxu0 0.0
        %1987 = vmatpush1.msra.mxu0 0.0
        %1988 = vmatprep.subr.mxu0 0.0
        %1989 = vmatpush1.msra.mxu0 0.0
        %1990 = vmatprep.subr.mxu0 0.0
        %1991 = vmatpush1.msra.mxu0 0.0
        %1992 = vmatprep.subr.mxu0 0.0
        %1993 = vmatpush1.msra.mxu0 0.0
        %1994 = vmatprep.subr.mxu0 0.0
        %1995 = vmatpush1.msra.mxu0 0.0
        %1996 = vmatprep.subr.mxu0 0.0
        %1997 = vmatpush1.msra.mxu0 0.0
        %1998 = vmatprep.subr.mxu0 0.0
        %1999 = vmatpush1.msra.mxu0 0.0
        %2000 = vmatprep.subr.mxu0 0.0
        %2001 = vmatpush1.msra.mxu0 0.0
        %2002 = vmatprep.subr.mxu0 0.0
        %2003 = vmatpush1.msra.mxu0 0.0
        %2004 = vmatprep.subr.mxu0 0.0
        %2005 = vmatpush1.msra.mxu0 0.0
        %2006 = vmatprep.subr.mxu0 0.0
        %2007 = vmatpush1.msra.mxu0 0.0
        %2008 = vmatprep.subr.mxu0 0.0
        %2009 = vmatpush1.msra.mxu0 0.0
        %2010 = vmatprep.subr.mxu0 0.0
        %2011 = vmatpush1.msra.mxu0 0.0
        %2012 = vmatprep.subr.mxu0 0.0
        %2013 = vmatpush1.msra.mxu0 0.0
        %2014 = vmatprep.subr.mxu0 0.0
        %2015 = vmatpush1.msra.mxu0 0.0
        %2016 = vmatprep.subr.mxu0 0.0
        %2017 = vmatpush1.msra.mxu0 0.0
        %2018 = vmatprep.subr.mxu0 0.0
        %2019 = vmatpush1.msra.mxu0 0.0
        %2020 = vmatprep.subr.mxu0 0.0
        %2021 = vmatpush1.msra.mxu0 0.0
        %2022 = vmatprep.subr.mxu0 0.0
        %2023 = vmatpush1.msra.mxu0 0.0
        %2024 = vmatprep.subr.mxu0 0.0
        %2025 = vmatpush1.msra.mxu0 0.0
        %2026 = vmatprep.subr.mxu0 0.0
        %2027 = vmatpush1.msra.mxu0 0.0
        %2028 = vmatprep.subr.mxu0 0.0
        %2029 = vmatpush1.msra.mxu0 0.0
        %2030 = vmatprep.subr.mxu0 0.0
        %2031 = vmatpush1.msra.mxu0 0.0
        %2032 = vmatprep.subr.mxu0 0.0
        %2033 = vmatpush1.msra.mxu0 0.0
        %2034 = vmatprep.subr.mxu0 0.0
        %2035 = vmatpush1.msra.mxu0 0.0
        %2036 = vmatprep.subr.mxu0 0.0
        %2037 = vmatpush1.msra.mxu0 0.0
        %2038 = vmatprep.subr.mxu0 0.0
        %2039 = vmatpush1.msra.mxu0 0.0
        %2040 = vmatprep.mubr.f32.mxu0 0.0
        %2041 = vmatmul.mubr.f32.gmra.mrb[0].mxu0 %v1974
        %v2042 = vpop.f32.mrb[0].mxu0
        %v2043 = vadd.f32 %v654, %v2042
        %v2044 = vpop.f32.mrb[0].mxu0
        %2045 = vdwg.mxu0
        %v2046 = vadd.f32 %v2043, %v1860
        %v2047 = vxor.u32 %v2046, 2147483648
        %v2048 = vmul.f32 %v2047, 1.442695
        %v2049 = vpow.pop %v2048
        %v2050 = vadd.f32 %v2049, 1.0
        %v2051 = vrcp.pop %v2050
        %v2052 = vmul.f32 1.0, %v2051
        %v2053 = vmul.f32 %v2052, %v1872
        %2055 = vrot.lane.b32.xlu0 %v2053, 64
        %v2056 = vpop.permute.xlu0 %2055
        %v2058 = vadd.f32 %v2043, %v2056
        %v2059 = vtanh.pop %v2058
        %v2060 = vsub.f32 1.0, %v2052
        %2062 = vrot.lane.b32.xlu0 %v2059, 96
        %v2063 = vpop.permute.xlu0 %2062
        %v2065 = vmul.f32 %v2060, %v2063
        %v2066 = vmul.f32 %v2052, %v1708
        %v2067 = vadd.f32 %v2065, %v2066
        %2069 = vrot.lane.b32.xlu0 %v2067, 96
        %v2070 = vpop.permute.xlu0 %2069
        %v2071 = vsel %vm656, %v2070, 0
        %2073 = vmatprep.subr.mxu0 0.0
        %2074 = vmatpush1.msra.mxu0 %v1710
        %2075 = vmatprep.subr.mxu0 0.0
        %2076 = vmatpush1.msra.mxu0 %v1711
        %2077 = vmatprep.subr.mxu0 0.0
        %2078 = vmatpush1.msra.mxu0 %v1712
        %2079 = vmatprep.subr.mxu0 0.0
        %2080 = vmatpush1.msra.mxu0 %v1713
        %2081 = vmatprep.subr.mxu0 0.0
        %2082 = vmatpush1.msra.mxu0 0.0
        %2083 = vmatprep.subr.mxu0 0.0
        %2084 = vmatpush1.msra.mxu0 0.0
        %2085 = vmatprep.subr.mxu0 0.0
        %2086 = vmatpush1.msra.mxu0 0.0
        %2087 = vmatprep.subr.mxu0 0.0
        %2088 = vmatpush1.msra.mxu0 0.0
        %2089 = vmatprep.subr.mxu0 0.0
        %2090 = vmatpush1.msra.mxu0 0.0
        %2091 = vmatprep.subr.mxu0 0.0
        %2092 = vmatpush1.msra.mxu0 0.0
        %2093 = vmatprep.subr.mxu0 0.0
        %2094 = vmatpush1.msra.mxu0 0.0
        %2095 = vmatprep.subr.mxu0 0.0
        %2096 = vmatpush1.msra.mxu0 0.0
        %2097 = vmatprep.subr.mxu0 0.0
        %2098 = vmatpush1.msra.mxu0 0.0
        %2099 = vmatprep.subr.mxu0 0.0
        %2100 = vmatpush1.msra.mxu0 0.0
        %2101 = vmatprep.subr.mxu0 0.0
        %2102 = vmatpush1.msra.mxu0 0.0
        %2103 = vmatprep.subr.mxu0 0.0
        %2104 = vmatpush1.msra.mxu0 0.0
        %2105 = vmatprep.subr.mxu0 0.0
        %2106 = vmatpush1.msra.mxu0 0.0
        %2107 = vmatprep.subr.mxu0 0.0
        %2108 = vmatpush1.msra.mxu0 0.0
        %2109 = vmatprep.subr.mxu0 0.0
        %2110 = vmatpush1.msra.mxu0 0.0
        %2111 = vmatprep.subr.mxu0 0.0
        %2112 = vmatpush1.msra.mxu0 0.0
        %2113 = vmatprep.subr.mxu0 0.0
        %2114 = vmatpush1.msra.mxu0 0.0
        %2115 = vmatprep.subr.mxu0 0.0
        %2116 = vmatpush1.msra.mxu0 0.0
        %2117 = vmatprep.subr.mxu0 0.0
        %2118 = vmatpush1.msra.mxu0 0.0
        %2119 = vmatprep.subr.mxu0 0.0
        %2120 = vmatpush1.msra.mxu0 0.0
        %2121 = vmatprep.subr.mxu0 0.0
        %2122 = vmatpush1.msra.mxu0 0.0
        %2123 = vmatprep.subr.mxu0 0.0
        %2124 = vmatpush1.msra.mxu0 0.0
        %2125 = vmatprep.subr.mxu0 0.0
        %2126 = vmatpush1.msra.mxu0 0.0
        %2127 = vmatprep.subr.mxu0 0.0
        %2128 = vmatpush1.msra.mxu0 0.0
        %2129 = vmatprep.subr.mxu0 0.0
        %2130 = vmatpush1.msra.mxu0 0.0
        %2131 = vmatprep.subr.mxu0 0.0
        %2132 = vmatpush1.msra.mxu0 0.0
        %2133 = vmatprep.subr.mxu0 0.0
        %2134 = vmatpush1.msra.mxu0 0.0
        %2135 = vmatprep.subr.mxu0 0.0
        %2136 = vmatpush1.msra.mxu0 0.0
        %2137 = vmatprep.mubr.f32.mxu0 0.0
        %2138 = vmatmul.mubr.f32.gmra.mrb[0].mxu0 %v2071
        %v2139 = vpop.f32.mrb[0].mxu0
        %v2140 = vadd.f32 %v1893, %v2139
        %v2141 = vpop.f32.mrb[0].mxu0
        %2142 = vdwg.mxu0
        %v2143 = vmul.f32 %v2140, %v506
        %v2144 = vadd.f32 %v2143, %v497
        %2146 = vrot.lane.b32.xlu0 %v2144, 16
        %v2147 = vpop.permute.xlu0 %2146
        %vm2149 = vcmask 130048
        %v2150 = vsel %vm2149, %v1971, %v2147
        %2151 = vst.msk [vmem:[%s490] sm:$0xff] %vm656, %v2150
        %s2152 = sand.u32 %s282, 1
        %s2153 = scalar_lea.sflag [#allocation4], %s2152
        %s2154 = sand.u32 %s282, 1
        %s2155 = smul.addr %s2154, 8
        %s2156 = scalar_lea.vmem [#allocation13], %s2155
        // Predicated region
        $region89: #{tpu_custom_call.1} parent=63 // pred_check
          %p2157 = pneg %p292
        $region90: #{tpu_custom_call.1} parent=63 // pred_check_branch
          %2159 = sbr.rel (%p2157) target = $region92
        $region91: #{tpu_custom_call.1} parent=63 // pred_region
          %s2161 = ssub.s32 128, 128
          %2162 = vsyncadd %s2153, %s2161
          %s2163 = smul.addr %s33, 128
          %s2164 = scalar_lea.hbm %s11, %s2163
          %s2166 = sshll.u32 %s2156, 4
          %s2167 = int_to_ptr.vmem [resolvable:$true] %s2166
          %2169 = dma.vmem_to_hbm [thread:$0]  %s2167, 128, %s2164, %s2153
        $region92: #{tpu_custom_call.1} parent=63 // pred_fallthru
          _
      $region64: #{tpu_custom_call.1} parent=5 // pred_fallthru
        _
      %p2170 = scmp.le.s32.totalorder 2, %s28
      // Predicated region
      $region93: #{tpu_custom_call.1} parent=5 // pred_check
        %p2171 = pneg %p2170
      $region94: #{tpu_custom_call.1} parent=5 // pred_check_branch
        %2173 = sbr.rel (%p2171) target = $region96
      $region95: #{tpu_custom_call.1} parent=5 // pred_region
        %s2174 = ssub.s32 %s28, 2
        // Predicated region
        $region97: #{tpu_custom_call.1} parent=95 // pred_check
          %p2175 = pneg %p298
        $region98: #{tpu_custom_call.1} parent=95 // pred_check_branch
          %2177 = sbr.rel (%p2175) target = $region100
        $region99: #{tpu_custom_call.1} parent=95 // pred_region
          %s2178 = sand.u32 %s283, 1
          %s2179 = scalar_lea.sflag [#allocation4], %s2178
          %s2180 = sand.u32 %s283, 1
          %s2181 = smul.addr %s2180, 8
          %s2182 = scalar_lea.vmem [#allocation13], %s2181
          %2183 = dma.done %s2179, 128
        $region100: #{tpu_custom_call.1} parent=95 // pred_fallthru
          _
      $region96: #{tpu_custom_call.1} parent=5 // pred_fallthru
        _
    $region6: #{tpu_custom_call.1} parent=1 // loop_footer
      %s32 = sadd.s32 1, %s28
    $region7: #{tpu_custom_call.1} parent=1 // loop_footer_branch
      %27 = sbr.rel target = $region3
    $region8: #{tpu_custom_call.1} parent=1 // loop_exit
      _
    %2184 = vsyncpa [#allocation3], 1
    %s2185 = scalar_lea.sflag [#allocation3], 1
    %2186 = vsyncpa %s2185, 1
    %2187 = vsyncpa [#allocation6], 1
    %s2188 = scalar_lea.sflag [#allocation6], 1
    %2189 = vsyncpa %s2188, 1
    %2190 = vsyncpa [#allocation9], 1
    %2191 = vsyncpa [#allocation12], 1
    %2192 = vsyncpa [#allocation4], 1
    %s2193 = scalar_lea.sflag [#allocation4], 1
    %2194 = vsyncpa %s2193, 1

</llo_original>
